<compile_context>
chip_gen: v7x
topology: tpu7x:2x2x1
jax: 0.10.0
libtpu: 0.0.40
codegen_flags: <defaults>
</compile_context>

<pallas_src>
import jax
import jax.numpy as jnp
from jax.experimental import pallas as pl
from jax.experimental.pallas import tpu as pltpu


def _add_kernel(a_ref, b_ref, o_ref):
    o_ref[...] = a_ref[...] + b_ref[...]


# Per-operand byte thresholds / targets.
_GRIDLESS_MAX_BYTES = 2 * 1024 * 1024    # 3 whole-array VMEM bufs ~= 6 MB -> fits v5e 16 MiB scoped default
_TARGET_BLOCK_BYTES = 4 * 1024 * 1024    # tiled path: 3 refs x 2 pipeline bufs ~= 24 MB -> fits v7x 32 MiB scoped default


def _gridless_add(a: jax.Array, b: jax.Array) -> jax.Array:
    # Whole array as a single VMEM block, no grid, no reshape, output aliased
    # in place onto the first input.
    return pl.pallas_call(
        _add_kernel,
        out_shape=jax.ShapeDtypeStruct(a.shape, a.dtype),
        in_specs=[
            pl.BlockSpec(memory_space=pltpu.MemorySpace.VMEM),
            pl.BlockSpec(memory_space=pltpu.MemorySpace.VMEM),
        ],
        out_specs=pl.BlockSpec(memory_space=pltpu.MemorySpace.VMEM),
        input_output_aliases={0: 0},
    )(a, b)


def _tiled_add(a: jax.Array, b: jax.Array) -> jax.Array:
    # Fallback for large operands. Merge all leading dims (layout-preserving:
    # the last two dims are untouched, so this lowers to a bitcast, not a
    # relayout copy) and tile the merged axis into MB-scale blocks.
    orig_shape = a.shape
    if a.ndim < 2:
        a = a.reshape(1, -1)
        b = b.reshape(1, -1)
    lead = 1
    for d in a.shape[:-2]:
        lead *= d
    h, w = a.shape[-2], a.shape[-1]
    a3 = a.reshape(lead, h, w)
    b3 = b.reshape(lead, h, w)

    # Budget block bytes against the *padded* per-row VMEM footprint
    # (trailing dims pad to (sublane, 128) tiles; sub-32-bit dtypes pack
    # more sublanes but padding to 8 is a conservative estimate).
    itemsize = a.dtype.itemsize
    sublane = 8 * max(1, 4 // itemsize)
    padded_row_bytes = (pl.cdiv(h, sublane) * sublane) * (pl.cdiv(w, 128) * 128) * itemsize
    rows_per_block = max(1, min(lead, _TARGET_BLOCK_BYTES // padded_row_bytes))
    grid = (pl.cdiv(lead, rows_per_block),)

    spec = pl.BlockSpec((rows_per_block, h, w), lambda i: (i, 0, 0))
    out3 = pl.pallas_call(
        _add_kernel,
        out_shape=jax.ShapeDtypeStruct(a3.shape, a3.dtype),
        grid=grid,
        in_specs=[spec, spec],
        out_specs=spec,
        input_output_aliases={0: 0},
        compiler_params=pltpu.CompilerParams(
            dimension_semantics=("parallel",),
        ),
    )(a3, b3)
    return out3.reshape(orig_shape)


def pallas_add(x926: jax.Array, x911: jax.Array) -> jax.Array:
    assert x926.shape == x911.shape and x926.dtype == x911.dtype
    nbytes = x926.size * x926.dtype.itemsize
    if nbytes <= _GRIDLESS_MAX_BYTES:
        # The module's (1, 384, 7, 7) f32 operands (~75 KB) take this path.
        return _gridless_add(x926, x911)
    return _tiled_add(x926, x911)


if __name__ == "__main__":
    key = jax.random.PRNGKey(0)
    k1, k2 = jax.random.split(key)
    # Shapes from the module: torch.Size([1, 384, 7, 7])
    x926 = jax.random.normal(k1, (1, 384, 7, 7), dtype=jnp.float32)
    x911 = jax.random.normal(k2, (1, 384, 7, 7), dtype=jnp.float32)

    out = pallas_add(x926, x911)
    jax.block_until_ready(out)

    # Correctness check against plain-JAX reference.
    ref = x926 + x911
    assert out.shape == (1, 384, 7, 7)
    assert out.dtype == ref.dtype
    assert jnp.allclose(out, ref, atol=1e-6, rtol=1e-6)

    print("KERNEL_OK")
</pallas_src>

<mosaic_0001>
module attributes {stable_mosaic.version = 11 : i64} {
  func.func @_add_kernel(%arg0: memref<1x384x7x7xf32, #tpu.memory_space<vmem>>, %arg1: memref<1x384x7x7xf32, #tpu.memory_space<vmem>>, %arg2: memref<1x384x7x7xf32, #tpu.memory_space<vmem>>) attributes {dimension_semantics = [], scalar_prefetch = 0 : i64, scratch_operands = 0 : i64, tpu.core_type = #tpu.core_type<tc>} {
    %c0 = arith.constant 0 : index
    %c0_0 = arith.constant 0 : index
    %c0_1 = arith.constant 0 : index
    %c0_2 = arith.constant 0 : index
    %0 = vector.load %arg0[%c0, %c0_0, %c0_1, %c0_2] : memref<1x384x7x7xf32, #tpu.memory_space<vmem>>, vector<1x384x7x7xf32>
    %c0_3 = arith.constant 0 : index
    %c0_4 = arith.constant 0 : index
    %c0_5 = arith.constant 0 : index
    %c0_6 = arith.constant 0 : index
    %1 = vector.load %arg1[%c0_3, %c0_4, %c0_5, %c0_6] : memref<1x384x7x7xf32, #tpu.memory_space<vmem>>, vector<1x384x7x7xf32>
    %2 = arith.addf %0, %1 : vector<1x384x7x7xf32>
    %c0_7 = arith.constant 0 : index
    %c0_8 = arith.constant 0 : index
    %c0_9 = arith.constant 0 : index
    %c0_10 = arith.constant 0 : index
    %3 = vector.load %arg2[%c0_7, %c0_8, %c0_9, %c0_10] : memref<1x384x7x7xf32, #tpu.memory_space<vmem>>, vector<1x384x7x7xf32>
    tpu.vector_store %arg2[%c0_7, %c0_8, %c0_9, %c0_10], %2 {strides = array<i32>} : memref<1x384x7x7xf32, #tpu.memory_space<vmem>>, vector<1x384x7x7xf32>,
    return
  }
}

</mosaic_0001>

<llo_original>
// kernel: tpu_custom_call.1
$region0: #{tpu_custom_call.1}
  #allocation0 [shape = 'u32[]', space=smem, size = 0x4, offset = 0x4, fixed_abs, tag = 'smem constant byte address 0x4 - core index']
  #allocation1 [shape = 'u32[144,128]{1,0:T(1,128)}', space=vmem, size = 0x12000, scoped, tag = 'internal scratch']
  %s0 = inlined_call_operand.vmem [shape: f32[1,384,7,7], index: 0, kind: input, shape index: {}, may-alias: {0,2}]
  %s1 = inlined_call_operand.vmem [shape: f32[1,384,7,7], index: 1, kind: input, shape index: {}]
  %s2 = inlined_call_operand.vmem [shape: f32[1,384,7,7], index: 2, kind: output, shape index: {}, may-alias: {0,2}]
  %s3 = sld [smem:[#allocation0]]
  $region18: #{tpu_custom_call.1} parent=0
    _
  %s5 = ssub.s32 1, %s3
  %s6 = scalar_select 0, %s5, %s3
  // Predicated region
  $region2: #{tpu_custom_call.1} parent=0 // pred_check
    _
  $region3: #{tpu_custom_call.1} parent=0 // pred_check_branch
    %8 = sbr.rel (0) target = $region5
  $region4: #{tpu_custom_call.1} parent=0 // pred_region
    _
  $region5: #{tpu_custom_call.1} parent=0 // pred_fallthru
    _
  // Predicated region
  $region6: #{tpu_custom_call.1} parent=0 // pred_check
    _
  $region7: #{tpu_custom_call.1} parent=0 // pred_check_branch
    %10 = sbr.rel (0) target = $region9
  $region8: #{tpu_custom_call.1} parent=0 // pred_region
    _
  $region9: #{tpu_custom_call.1} parent=0 // pred_fallthru
    _
  %v11 = vld [vmem:[%s0] sm:$0x7f]
  %v12 = vld [vmem:[%s0 + $0x8] sm:$0x7f]
  %v13 = vld [vmem:[%s0 + $0x10] sm:$0x7f]
  %v14 = vld [vmem:[%s0 + $0x18] sm:$0x7f]
  %v15 = vld [vmem:[%s0 + $0x20] sm:$0x7f]
  %v16 = vld [vmem:[%s0 + $0x28] sm:$0x7f]
  %v17 = vld [vmem:[%s0 + $0x30] sm:$0x7f]
  %v18 = vld [vmem:[%s0 + $0x38] sm:$0x7f]
  %v19 = vld [vmem:[%s0 + $0x40] sm:$0x7f]
  %v20 = vld [vmem:[%s0 + $0x48] sm:$0x7f]
  %v21 = vld [vmem:[%s0 + $0x50] sm:$0x7f]
  %v22 = vld [vmem:[%s0 + $0x58] sm:$0x7f]
  %v23 = vld [vmem:[%s0 + $0x60] sm:$0x7f]
  %v24 = vld [vmem:[%s0 + $0x68] sm:$0x7f]
  %v25 = vld [vmem:[%s0 + $0x70] sm:$0x7f]
  %v26 = vld [vmem:[%s0 + $0x78] sm:$0x7f]
  %v27 = vld [vmem:[%s0 + $0x80] sm:$0x7f]
  %v28 = vld [vmem:[%s0 + $0x88] sm:$0x7f]
  %v29 = vld [vmem:[%s0 + $0x90] sm:$0x7f]
  %v30 = vld [vmem:[%s0 + $0x98] sm:$0x7f]
  %v31 = vld [vmem:[%s0 + $0xa0] sm:$0x7f]
  %v32 = vld [vmem:[%s0 + $0xa8] sm:$0x7f]
  %v33 = vld [vmem:[%s0 + $0xb0] sm:$0x7f]
  %v34 = vld [vmem:[%s0 + $0xb8] sm:$0x7f]
  %v35 = vld [vmem:[%s0 + $0xc0] sm:$0x7f]
  %v36 = vld [vmem:[%s0 + $0xc8] sm:$0x7f]
  %v37 = vld [vmem:[%s0 + $0xd0] sm:$0x7f]
  %v38 = vld [vmem:[%s0 + $0xd8] sm:$0x7f]
  %v39 = vld [vmem:[%s0 + $0xe0] sm:$0x7f]
  %v40 = vld [vmem:[%s0 + $0xe8] sm:$0x7f]
  %v41 = vld [vmem:[%s0 + $0xf0] sm:$0x7f]
  %v42 = vld [vmem:[%s0 + $0xf8] sm:$0x7f]
  %v43 = vld [vmem:[%s0 + $0x100] sm:$0x7f]
  %v44 = vld [vmem:[%s0 + $0x108] sm:$0x7f]
  %v45 = vld [vmem:[%s0 + $0x110] sm:$0x7f]
  %v46 = vld [vmem:[%s0 + $0x118] sm:$0x7f]
  %v47 = vld [vmem:[%s0 + $0x120] sm:$0x7f]
  %v48 = vld [vmem:[%s0 + $0x128] sm:$0x7f]
  %v49 = vld [vmem:[%s0 + $0x130] sm:$0x7f]
  %v50 = vld [vmem:[%s0 + $0x138] sm:$0x7f]
  %v51 = vld [vmem:[%s0 + $0x140] sm:$0x7f]
  %v52 = vld [vmem:[%s0 + $0x148] sm:$0x7f]
  %v53 = vld [vmem:[%s0 + $0x150] sm:$0x7f]
  %v54 = vld [vmem:[%s0 + $0x158] sm:$0x7f]
  %v55 = vld [vmem:[%s0 + $0x160] sm:$0x7f]
  %v56 = vld [vmem:[%s0 + $0x168] sm:$0x7f]
  %v57 = vld [vmem:[%s0 + $0x170] sm:$0x7f]
  %v58 = vld [vmem:[%s0 + $0x178] sm:$0x7f]
  %v59 = vld [vmem:[%s0 + $0x180] sm:$0x7f]
  %v60 = vld [vmem:[%s0 + $0x188] sm:$0x7f]
  %v61 = vld [vmem:[%s0 + $0x190] sm:$0x7f]
  %v62 = vld [vmem:[%s0 + $0x198] sm:$0x7f]
  %v63 = vld [vmem:[%s0 + $0x1a0] sm:$0x7f]
  %v64 = vld [vmem:[%s0 + $0x1a8] sm:$0x7f]
  %v65 = vld [vmem:[%s0 + $0x1b0] sm:$0x7f]
  %v66 = vld [vmem:[%s0 + $0x1b8] sm:$0x7f]
  %v67 = vld [vmem:[%s0 + $0x1c0] sm:$0x7f]
  %v68 = vld [vmem:[%s0 + $0x1c8] sm:$0x7f]
  %v69 = vld [vmem:[%s0 + $0x1d0] sm:$0x7f]
  %v70 = vld [vmem:[%s0 + $0x1d8] sm:$0x7f]
  %v71 = vld [vmem:[%s0 + $0x1e0] sm:$0x7f]
  %v72 = vld [vmem:[%s0 + $0x1e8] sm:$0x7f]
  %v73 = vld [vmem:[%s0 + $0x1f0] sm:$0x7f]
  %v74 = vld [vmem:[%s0 + $0x1f8] sm:$0x7f]
  %v75 = vld [vmem:[%s0 + $0x200] sm:$0x7f]
  %v76 = vld [vmem:[%s0 + $0x208] sm:$0x7f]
  %v77 = vld [vmem:[%s0 + $0x210] sm:$0x7f]
  %v78 = vld [vmem:[%s0 + $0x218] sm:$0x7f]
  %v79 = vld [vmem:[%s0 + $0x220] sm:$0x7f]
  %v80 = vld [vmem:[%s0 + $0x228] sm:$0x7f]
  %v81 = vld [vmem:[%s0 + $0x230] sm:$0x7f]
  %v82 = vld [vmem:[%s0 + $0x238] sm:$0x7f]
  %v83 = vld [vmem:[%s0 + $0x240] sm:$0x7f]
  %v84 = vld [vmem:[%s0 + $0x248] sm:$0x7f]
  %v85 = vld [vmem:[%s0 + $0x250] sm:$0x7f]
  %v86 = vld [vmem:[%s0 + $0x258] sm:$0x7f]
  %v87 = vld [vmem:[%s0 + $0x260] sm:$0x7f]
  %v88 = vld [vmem:[%s0 + $0x268] sm:$0x7f]
  %v89 = vld [vmem:[%s0 + $0x270] sm:$0x7f]
  %v90 = vld [vmem:[%s0 + $0x278] sm:$0x7f]
  %v91 = vld [vmem:[%s0 + $0x280] sm:$0x7f]
  %v92 = vld [vmem:[%s0 + $0x288] sm:$0x7f]
  %v93 = vld [vmem:[%s0 + $0x290] sm:$0x7f]
  %v94 = vld [vmem:[%s0 + $0x298] sm:$0x7f]
  %v95 = vld [vmem:[%s0 + $0x2a0] sm:$0x7f]
  %v96 = vld [vmem:[%s0 + $0x2a8] sm:$0x7f]
  %v97 = vld [vmem:[%s0 + $0x2b0] sm:$0x7f]
  %v98 = vld [vmem:[%s0 + $0x2b8] sm:$0x7f]
  %v99 = vld [vmem:[%s0 + $0x2c0] sm:$0x7f]
  %v100 = vld [vmem:[%s0 + $0x2c8] sm:$0x7f]
  %v101 = vld [vmem:[%s0 + $0x2d0] sm:$0x7f]
  %v102 = vld [vmem:[%s0 + $0x2d8] sm:$0x7f]
  %v103 = vld [vmem:[%s0 + $0x2e0] sm:$0x7f]
  %v104 = vld [vmem:[%s0 + $0x2e8] sm:$0x7f]
  %v105 = vld [vmem:[%s0 + $0x2f0] sm:$0x7f]
  %v106 = vld [vmem:[%s0 + $0x2f8] sm:$0x7f]
  %v107 = vld [vmem:[%s0 + $0x300] sm:$0x7f]
  %v108 = vld [vmem:[%s0 + $0x308] sm:$0x7f]
  %v109 = vld [vmem:[%s0 + $0x310] sm:$0x7f]
  %v110 = vld [vmem:[%s0 + $0x318] sm:$0x7f]
  %v111 = vld [vmem:[%s0 + $0x320] sm:$0x7f]
  %v112 = vld [vmem:[%s0 + $0x328] sm:$0x7f]
  %v113 = vld [vmem:[%s0 + $0x330] sm:$0x7f]
  %v114 = vld [vmem:[%s0 + $0x338] sm:$0x7f]
  %v115 = vld [vmem:[%s0 + $0x340] sm:$0x7f]
  %v116 = vld [vmem:[%s0 + $0x348] sm:$0x7f]
  %v117 = vld [vmem:[%s0 + $0x350] sm:$0x7f]
  %v118 = vld [vmem:[%s0 + $0x358] sm:$0x7f]
  %v119 = vld [vmem:[%s0 + $0x360] sm:$0x7f]
  %v120 = vld [vmem:[%s0 + $0x368] sm:$0x7f]
  %v121 = vld [vmem:[%s0 + $0x370] sm:$0x7f]
  %v122 = vld [vmem:[%s0 + $0x378] sm:$0x7f]
  %v123 = vld [vmem:[%s0 + $0x380] sm:$0x7f]
  %v124 = vld [vmem:[%s0 + $0x388] sm:$0x7f]
  %v125 = vld [vmem:[%s0 + $0x390] sm:$0x7f]
  %v126 = vld [vmem:[%s0 + $0x398] sm:$0x7f]
  %v127 = vld [vmem:[%s0 + $0x3a0] sm:$0x7f]
  %v128 = vld [vmem:[%s0 + $0x3a8] sm:$0x7f]
  %v129 = vld [vmem:[%s0 + $0x3b0] sm:$0x7f]
  %v130 = vld [vmem:[%s0 + $0x3b8] sm:$0x7f]
  %v131 = vld [vmem:[%s0 + $0x3c0] sm:$0x7f]
  %v132 = vld [vmem:[%s0 + $0x3c8] sm:$0x7f]
  %v133 = vld [vmem:[%s0 + $0x3d0] sm:$0x7f]
  %v134 = vld [vmem:[%s0 + $0x3d8] sm:$0x7f]
  %v135 = vld [vmem:[%s0 + $0x3e0] sm:$0x7f]
  %v136 = vld [vmem:[%s0 + $0x3e8] sm:$0x7f]
  %v137 = vld [vmem:[%s0 + $0x3f0] sm:$0x7f]
  %v138 = vld [vmem:[%s0 + $0x3f8] sm:$0x7f]
  %v139 = vld [vmem:[%s0 + $0x400] sm:$0x7f]
  %v140 = vld [vmem:[%s0 + $0x408] sm:$0x7f]
  %v141 = vld [vmem:[%s0 + $0x410] sm:$0x7f]
  %v142 = vld [vmem:[%s0 + $0x418] sm:$0x7f]
  %v143 = vld [vmem:[%s0 + $0x420] sm:$0x7f]
  %v144 = vld [vmem:[%s0 + $0x428] sm:$0x7f]
  %v145 = vld [vmem:[%s0 + $0x430] sm:$0x7f]
  %v146 = vld [vmem:[%s0 + $0x438] sm:$0x7f]
  %v147 = vld [vmem:[%s0 + $0x440] sm:$0x7f]
  %v148 = vld [vmem:[%s0 + $0x448] sm:$0x7f]
  %v149 = vld [vmem:[%s0 + $0x450] sm:$0x7f]
  %v150 = vld [vmem:[%s0 + $0x458] sm:$0x7f]
  %v151 = vld [vmem:[%s0 + $0x460] sm:$0x7f]
  %v152 = vld [vmem:[%s0 + $0x468] sm:$0x7f]
  %v153 = vld [vmem:[%s0 + $0x470] sm:$0x7f]
  %v154 = vld [vmem:[%s0 + $0x478] sm:$0x7f]
  %v155 = vld [vmem:[%s0 + $0x480] sm:$0x7f]
  %v156 = vld [vmem:[%s0 + $0x488] sm:$0x7f]
  %v157 = vld [vmem:[%s0 + $0x490] sm:$0x7f]
  %v158 = vld [vmem:[%s0 + $0x498] sm:$0x7f]
  %v159 = vld [vmem:[%s0 + $0x4a0] sm:$0x7f]
  %v160 = vld [vmem:[%s0 + $0x4a8] sm:$0x7f]
  %v161 = vld [vmem:[%s0 + $0x4b0] sm:$0x7f]
  %v162 = vld [vmem:[%s0 + $0x4b8] sm:$0x7f]
  %v163 = vld [vmem:[%s0 + $0x4c0] sm:$0x7f]
  %v164 = vld [vmem:[%s0 + $0x4c8] sm:$0x7f]
  %v165 = vld [vmem:[%s0 + $0x4d0] sm:$0x7f]
  %v166 = vld [vmem:[%s0 + $0x4d8] sm:$0x7f]
  %v167 = vld [vmem:[%s0 + $0x4e0] sm:$0x7f]
  %v168 = vld [vmem:[%s0 + $0x4e8] sm:$0x7f]
  %v169 = vld [vmem:[%s0 + $0x4f0] sm:$0x7f]
  %v170 = vld [vmem:[%s0 + $0x4f8] sm:$0x7f]
  %v171 = vld [vmem:[%s0 + $0x500] sm:$0x7f]
  %v172 = vld [vmem:[%s0 + $0x508] sm:$0x7f]
  %v173 = vld [vmem:[%s0 + $0x510] sm:$0x7f]
  %v174 = vld [vmem:[%s0 + $0x518] sm:$0x7f]
  %v175 = vld [vmem:[%s0 + $0x520] sm:$0x7f]
  %v176 = vld [vmem:[%s0 + $0x528] sm:$0x7f]
  %v177 = vld [vmem:[%s0 + $0x530] sm:$0x7f]
  %v178 = vld [vmem:[%s0 + $0x538] sm:$0x7f]
  %v179 = vld [vmem:[%s0 + $0x540] sm:$0x7f]
  %v180 = vld [vmem:[%s0 + $0x548] sm:$0x7f]
  %v181 = vld [vmem:[%s0 + $0x550] sm:$0x7f]
  %v182 = vld [vmem:[%s0 + $0x558] sm:$0x7f]
  %v183 = vld [vmem:[%s0 + $0x560] sm:$0x7f]
  %v184 = vld [vmem:[%s0 + $0x568] sm:$0x7f]
  %v185 = vld [vmem:[%s0 + $0x570] sm:$0x7f]
  %v186 = vld [vmem:[%s0 + $0x578] sm:$0x7f]
  %v187 = vld [vmem:[%s0 + $0x580] sm:$0x7f]
  %v188 = vld [vmem:[%s0 + $0x588] sm:$0x7f]
  %v189 = vld [vmem:[%s0 + $0x590] sm:$0x7f]
  %v190 = vld [vmem:[%s0 + $0x598] sm:$0x7f]
  %v191 = vld [vmem:[%s0 + $0x5a0] sm:$0x7f]
  %v192 = vld [vmem:[%s0 + $0x5a8] sm:$0x7f]
  %v193 = vld [vmem:[%s0 + $0x5b0] sm:$0x7f]
  %v194 = vld [vmem:[%s0 + $0x5b8] sm:$0x7f]
  %v195 = vld [vmem:[%s0 + $0x5c0] sm:$0x7f]
  %v196 = vld [vmem:[%s0 + $0x5c8] sm:$0x7f]
  %v197 = vld [vmem:[%s0 + $0x5d0] sm:$0x7f]
  %v198 = vld [vmem:[%s0 + $0x5d8] sm:$0x7f]
  %v199 = vld [vmem:[%s0 + $0x5e0] sm:$0x7f]
  %v200 = vld [vmem:[%s0 + $0x5e8] sm:$0x7f]
  %v201 = vld [vmem:[%s0 + $0x5f0] sm:$0x7f]
  %v202 = vld [vmem:[%s0 + $0x5f8] sm:$0x7f]
  %v203 = vld [vmem:[%s0 + $0x600] sm:$0x7f]
  %v204 = vld [vmem:[%s0 + $0x608] sm:$0x7f]
  %v205 = vld [vmem:[%s0 + $0x610] sm:$0x7f]
  %v206 = vld [vmem:[%s0 + $0x618] sm:$0x7f]
  %v207 = vld [vmem:[%s0 + $0x620] sm:$0x7f]
  %v208 = vld [vmem:[%s0 + $0x628] sm:$0x7f]
  %v209 = vld [vmem:[%s0 + $0x630] sm:$0x7f]
  %v210 = vld [vmem:[%s0 + $0x638] sm:$0x7f]
  %v211 = vld [vmem:[%s0 + $0x640] sm:$0x7f]
  %v212 = vld [vmem:[%s0 + $0x648] sm:$0x7f]
  %v213 = vld [vmem:[%s0 + $0x650] sm:$0x7f]
  %v214 = vld [vmem:[%s0 + $0x658] sm:$0x7f]
  %v215 = vld [vmem:[%s0 + $0x660] sm:$0x7f]
  %v216 = vld [vmem:[%s0 + $0x668] sm:$0x7f]
  %v217 = vld [vmem:[%s0 + $0x670] sm:$0x7f]
  %v218 = vld [vmem:[%s0 + $0x678] sm:$0x7f]
  %v219 = vld [vmem:[%s0 + $0x680] sm:$0x7f]
  %v220 = vld [vmem:[%s0 + $0x688] sm:$0x7f]
  %v221 = vld [vmem:[%s0 + $0x690] sm:$0x7f]
  %v222 = vld [vmem:[%s0 + $0x698] sm:$0x7f]
  %v223 = vld [vmem:[%s0 + $0x6a0] sm:$0x7f]
  %v224 = vld [vmem:[%s0 + $0x6a8] sm:$0x7f]
  %v225 = vld [vmem:[%s0 + $0x6b0] sm:$0x7f]
  %v226 = vld [vmem:[%s0 + $0x6b8] sm:$0x7f]
  %v227 = vld [vmem:[%s0 + $0x6c0] sm:$0x7f]
  %v228 = vld [vmem:[%s0 + $0x6c8] sm:$0x7f]
  %v229 = vld [vmem:[%s0 + $0x6d0] sm:$0x7f]
  %v230 = vld [vmem:[%s0 + $0x6d8] sm:$0x7f]
  %v231 = vld [vmem:[%s0 + $0x6e0] sm:$0x7f]
  %v232 = vld [vmem:[%s0 + $0x6e8] sm:$0x7f]
  %v233 = vld [vmem:[%s0 + $0x6f0] sm:$0x7f]
  %v234 = vld [vmem:[%s0 + $0x6f8] sm:$0x7f]
  %v235 = vld [vmem:[%s0 + $0x700] sm:$0x7f]
  %v236 = vld [vmem:[%s0 + $0x708] sm:$0x7f]
  %v237 = vld [vmem:[%s0 + $0x710] sm:$0x7f]
  %v238 = vld [vmem:[%s0 + $0x718] sm:$0x7f]
  %v239 = vld [vmem:[%s0 + $0x720] sm:$0x7f]
  %v240 = vld [vmem:[%s0 + $0x728] sm:$0x7f]
  %v241 = vld [vmem:[%s0 + $0x730] sm:$0x7f]
  %v242 = vld [vmem:[%s0 + $0x738] sm:$0x7f]
  %v243 = vld [vmem:[%s0 + $0x740] sm:$0x7f]
  %v244 = vld [vmem:[%s0 + $0x748] sm:$0x7f]
  %v245 = vld [vmem:[%s0 + $0x750] sm:$0x7f]
  %v246 = vld [vmem:[%s0 + $0x758] sm:$0x7f]
  %v247 = vld [vmem:[%s0 + $0x760] sm:$0x7f]
  %v248 = vld [vmem:[%s0 + $0x768] sm:$0x7f]
  %v249 = vld [vmem:[%s0 + $0x770] sm:$0x7f]
  %v250 = vld [vmem:[%s0 + $0x778] sm:$0x7f]
  %v251 = vld [vmem:[%s0 + $0x780] sm:$0x7f]
  %v252 = vld [vmem:[%s0 + $0x788] sm:$0x7f]
  %v253 = vld [vmem:[%s0 + $0x790] sm:$0x7f]
  %v254 = vld [vmem:[%s0 + $0x798] sm:$0x7f]
  %v255 = vld [vmem:[%s0 + $0x7a0] sm:$0x7f]
  %v256 = vld [vmem:[%s0 + $0x7a8] sm:$0x7f]
  %v257 = vld [vmem:[%s0 + $0x7b0] sm:$0x7f]
  %v258 = vld [vmem:[%s0 + $0x7b8] sm:$0x7f]
  %v259 = vld [vmem:[%s0 + $0x7c0] sm:$0x7f]
  %v260 = vld [vmem:[%s0 + $0x7c8] sm:$0x7f]
  %v261 = vld [vmem:[%s0 + $0x7d0] sm:$0x7f]
  %v262 = vld [vmem:[%s0 + $0x7d8] sm:$0x7f]
  %v263 = vld [vmem:[%s0 + $0x7e0] sm:$0x7f]
  %v264 = vld [vmem:[%s0 + $0x7e8] sm:$0x7f]
  %v265 = vld [vmem:[%s0 + $0x7f0] sm:$0x7f]
  %v266 = vld [vmem:[%s0 + $0x7f8] sm:$0x7f]
  %v267 = vld [vmem:[%s0 + $0x800] sm:$0x7f]
  %v268 = vld [vmem:[%s0 + $0x808] sm:$0x7f]
  %v269 = vld [vmem:[%s0 + $0x810] sm:$0x7f]
  %v270 = vld [vmem:[%s0 + $0x818] sm:$0x7f]
  %v271 = vld [vmem:[%s0 + $0x820] sm:$0x7f]
  %v272 = vld [vmem:[%s0 + $0x828] sm:$0x7f]
  %v273 = vld [vmem:[%s0 + $0x830] sm:$0x7f]
  %v274 = vld [vmem:[%s0 + $0x838] sm:$0x7f]
  %v275 = vld [vmem:[%s0 + $0x840] sm:$0x7f]
  %v276 = vld [vmem:[%s0 + $0x848] sm:$0x7f]
  %v277 = vld [vmem:[%s0 + $0x850] sm:$0x7f]
  %v278 = vld [vmem:[%s0 + $0x858] sm:$0x7f]
  %v279 = vld [vmem:[%s0 + $0x860] sm:$0x7f]
  %v280 = vld [vmem:[%s0 + $0x868] sm:$0x7f]
  %v281 = vld [vmem:[%s0 + $0x870] sm:$0x7f]
  %v282 = vld [vmem:[%s0 + $0x878] sm:$0x7f]
  %v283 = vld [vmem:[%s0 + $0x880] sm:$0x7f]
  %v284 = vld [vmem:[%s0 + $0x888] sm:$0x7f]
  %v285 = vld [vmem:[%s0 + $0x890] sm:$0x7f]
  %v286 = vld [vmem:[%s0 + $0x898] sm:$0x7f]
  %v287 = vld [vmem:[%s0 + $0x8a0] sm:$0x7f]
  %v288 = vld [vmem:[%s0 + $0x8a8] sm:$0x7f]
  %v289 = vld [vmem:[%s0 + $0x8b0] sm:$0x7f]
  %v290 = vld [vmem:[%s0 + $0x8b8] sm:$0x7f]
  %v291 = vld [vmem:[%s0 + $0x8c0] sm:$0x7f]
  %v292 = vld [vmem:[%s0 + $0x8c8] sm:$0x7f]
  %v293 = vld [vmem:[%s0 + $0x8d0] sm:$0x7f]
  %v294 = vld [vmem:[%s0 + $0x8d8] sm:$0x7f]
  %v295 = vld [vmem:[%s0 + $0x8e0] sm:$0x7f]
  %v296 = vld [vmem:[%s0 + $0x8e8] sm:$0x7f]
  %v297 = vld [vmem:[%s0 + $0x8f0] sm:$0x7f]
  %v298 = vld [vmem:[%s0 + $0x8f8] sm:$0x7f]
  %v299 = vld [vmem:[%s0 + $0x900] sm:$0x7f]
  %v300 = vld [vmem:[%s0 + $0x908] sm:$0x7f]
  %v301 = vld [vmem:[%s0 + $0x910] sm:$0x7f]
  %v302 = vld [vmem:[%s0 + $0x918] sm:$0x7f]
  %v303 = vld [vmem:[%s0 + $0x920] sm:$0x7f]
  %v304 = vld [vmem:[%s0 + $0x928] sm:$0x7f]
  %v305 = vld [vmem:[%s0 + $0x930] sm:$0x7f]
  %v306 = vld [vmem:[%s0 + $0x938] sm:$0x7f]
  %v307 = vld [vmem:[%s0 + $0x940] sm:$0x7f]
  %v308 = vld [vmem:[%s0 + $0x948] sm:$0x7f]
  %v309 = vld [vmem:[%s0 + $0x950] sm:$0x7f]
  %v310 = vld [vmem:[%s0 + $0x958] sm:$0x7f]
  %v311 = vld [vmem:[%s0 + $0x960] sm:$0x7f]
  %v312 = vld [vmem:[%s0 + $0x968] sm:$0x7f]
  %v313 = vld [vmem:[%s0 + $0x970] sm:$0x7f]
  %v314 = vld [vmem:[%s0 + $0x978] sm:$0x7f]
  %v315 = vld [vmem:[%s0 + $0x980] sm:$0x7f]
  %v316 = vld [vmem:[%s0 + $0x988] sm:$0x7f]
  %v317 = vld [vmem:[%s0 + $0x990] sm:$0x7f]
  %v318 = vld [vmem:[%s0 + $0x998] sm:$0x7f]
  %v319 = vld [vmem:[%s0 + $0x9a0] sm:$0x7f]
  %v320 = vld [vmem:[%s0 + $0x9a8] sm:$0x7f]
  %v321 = vld [vmem:[%s0 + $0x9b0] sm:$0x7f]
  %v322 = vld [vmem:[%s0 + $0x9b8] sm:$0x7f]
  %v323 = vld [vmem:[%s0 + $0x9c0] sm:$0x7f]
  %v324 = vld [vmem:[%s0 + $0x9c8] sm:$0x7f]
  %v325 = vld [vmem:[%s0 + $0x9d0] sm:$0x7f]
  %v326 = vld [vmem:[%s0 + $0x9d8] sm:$0x7f]
  %v327 = vld [vmem:[%s0 + $0x9e0] sm:$0x7f]
  %v328 = vld [vmem:[%s0 + $0x9e8] sm:$0x7f]
  %v329 = vld [vmem:[%s0 + $0x9f0] sm:$0x7f]
  %v330 = vld [vmem:[%s0 + $0x9f8] sm:$0x7f]
  %v331 = vld [vmem:[%s0 + $0xa00] sm:$0x7f]
  %v332 = vld [vmem:[%s0 + $0xa08] sm:$0x7f]
  %v333 = vld [vmem:[%s0 + $0xa10] sm:$0x7f]
  %v334 = vld [vmem:[%s0 + $0xa18] sm:$0x7f]
  %v335 = vld [vmem:[%s0 + $0xa20] sm:$0x7f]
  %v336 = vld [vmem:[%s0 + $0xa28] sm:$0x7f]
  %v337 = vld [vmem:[%s0 + $0xa30] sm:$0x7f]
  %v338 = vld [vmem:[%s0 + $0xa38] sm:$0x7f]
  %v339 = vld [vmem:[%s0 + $0xa40] sm:$0x7f]
  %v340 = vld [vmem:[%s0 + $0xa48] sm:$0x7f]
  %v341 = vld [vmem:[%s0 + $0xa50] sm:$0x7f]
  %v342 = vld [vmem:[%s0 + $0xa58] sm:$0x7f]
  %v343 = vld [vmem:[%s0 + $0xa60] sm:$0x7f]
  %v344 = vld [vmem:[%s0 + $0xa68] sm:$0x7f]
  %v345 = vld [vmem:[%s0 + $0xa70] sm:$0x7f]
  %v346 = vld [vmem:[%s0 + $0xa78] sm:$0x7f]
  %v347 = vld [vmem:[%s0 + $0xa80] sm:$0x7f]
  %v348 = vld [vmem:[%s0 + $0xa88] sm:$0x7f]
  %v349 = vld [vmem:[%s0 + $0xa90] sm:$0x7f]
  %v350 = vld [vmem:[%s0 + $0xa98] sm:$0x7f]
  %v351 = vld [vmem:[%s0 + $0xaa0] sm:$0x7f]
  %v352 = vld [vmem:[%s0 + $0xaa8] sm:$0x7f]
  %v353 = vld [vmem:[%s0 + $0xab0] sm:$0x7f]
  %v354 = vld [vmem:[%s0 + $0xab8] sm:$0x7f]
  %v355 = vld [vmem:[%s0 + $0xac0] sm:$0x7f]
  %v356 = vld [vmem:[%s0 + $0xac8] sm:$0x7f]
  %v357 = vld [vmem:[%s0 + $0xad0] sm:$0x7f]
  %v358 = vld [vmem:[%s0 + $0xad8] sm:$0x7f]
  %v359 = vld [vmem:[%s0 + $0xae0] sm:$0x7f]
  %v360 = vld [vmem:[%s0 + $0xae8] sm:$0x7f]
  %v361 = vld [vmem:[%s0 + $0xaf0] sm:$0x7f]
  %v362 = vld [vmem:[%s0 + $0xaf8] sm:$0x7f]
  %v363 = vld [vmem:[%s0 + $0xb00] sm:$0x7f]
  %v364 = vld [vmem:[%s0 + $0xb08] sm:$0x7f]
  %v365 = vld [vmem:[%s0 + $0xb10] sm:$0x7f]
  %v366 = vld [vmem:[%s0 + $0xb18] sm:$0x7f]
  %v367 = vld [vmem:[%s0 + $0xb20] sm:$0x7f]
  %v368 = vld [vmem:[%s0 + $0xb28] sm:$0x7f]
  %v369 = vld [vmem:[%s0 + $0xb30] sm:$0x7f]
  %v370 = vld [vmem:[%s0 + $0xb38] sm:$0x7f]
  %v371 = vld [vmem:[%s0 + $0xb40] sm:$0x7f]
  %v372 = vld [vmem:[%s0 + $0xb48] sm:$0x7f]
  %v373 = vld [vmem:[%s0 + $0xb50] sm:$0x7f]
  %v374 = vld [vmem:[%s0 + $0xb58] sm:$0x7f]
  %v375 = vld [vmem:[%s0 + $0xb60] sm:$0x7f]
  %v376 = vld [vmem:[%s0 + $0xb68] sm:$0x7f]
  %v377 = vld [vmem:[%s0 + $0xb70] sm:$0x7f]
  %v378 = vld [vmem:[%s0 + $0xb78] sm:$0x7f]
  %v379 = vld [vmem:[%s0 + $0xb80] sm:$0x7f]
  %v380 = vld [vmem:[%s0 + $0xb88] sm:$0x7f]
  %v381 = vld [vmem:[%s0 + $0xb90] sm:$0x7f]
  %v382 = vld [vmem:[%s0 + $0xb98] sm:$0x7f]
  %v383 = vld [vmem:[%s0 + $0xba0] sm:$0x7f]
  %v384 = vld [vmem:[%s0 + $0xba8] sm:$0x7f]
  %v385 = vld [vmem:[%s0 + $0xbb0] sm:$0x7f]
  %v386 = vld [vmem:[%s0 + $0xbb8] sm:$0x7f]
  %v387 = vld [vmem:[%s0 + $0xbc0] sm:$0x7f]
  %v388 = vld [vmem:[%s0 + $0xbc8] sm:$0x7f]
  %v389 = vld [vmem:[%s0 + $0xbd0] sm:$0x7f]
  %v390 = vld [vmem:[%s0 + $0xbd8] sm:$0x7f]
  %v391 = vld [vmem:[%s0 + $0xbe0] sm:$0x7f]
  %v392 = vld [vmem:[%s0 + $0xbe8] sm:$0x7f]
  %v393 = vld [vmem:[%s0 + $0xbf0] sm:$0x7f]
  %v394 = vld [vmem:[%s0 + $0xbf8] sm:$0x7f]
  %v395 = vld [vmem:[%s1] sm:$0x7f]
  %v396 = vld [vmem:[%s1 + $0x8] sm:$0x7f]
  %v397 = vld [vmem:[%s1 + $0x10] sm:$0x7f]
  %v398 = vld [vmem:[%s1 + $0x18] sm:$0x7f]
  %v399 = vld [vmem:[%s1 + $0x20] sm:$0x7f]
  %v400 = vld [vmem:[%s1 + $0x28] sm:$0x7f]
  %v401 = vld [vmem:[%s1 + $0x30] sm:$0x7f]
  %v402 = vld [vmem:[%s1 + $0x38] sm:$0x7f]
  %v403 = vld [vmem:[%s1 + $0x40] sm:$0x7f]
  %v404 = vld [vmem:[%s1 + $0x48] sm:$0x7f]
  %v405 = vld [vmem:[%s1 + $0x50] sm:$0x7f]
  %v406 = vld [vmem:[%s1 + $0x58] sm:$0x7f]
  %v407 = vld [vmem:[%s1 + $0x60] sm:$0x7f]
  %v408 = vld [vmem:[%s1 + $0x68] sm:$0x7f]
  %v409 = vld [vmem:[%s1 + $0x70] sm:$0x7f]
  %v410 = vld [vmem:[%s1 + $0x78] sm:$0x7f]
  %v411 = vld [vmem:[%s1 + $0x80] sm:$0x7f]
  %v412 = vld [vmem:[%s1 + $0x88] sm:$0x7f]
  %v413 = vld [vmem:[%s1 + $0x90] sm:$0x7f]
  %v414 = vld [vmem:[%s1 + $0x98] sm:$0x7f]
  %v415 = vld [vmem:[%s1 + $0xa0] sm:$0x7f]
  %v416 = vld [vmem:[%s1 + $0xa8] sm:$0x7f]
  %v417 = vld [vmem:[%s1 + $0xb0] sm:$0x7f]
  %v418 = vld [vmem:[%s1 + $0xb8] sm:$0x7f]
  %v419 = vld [vmem:[%s1 + $0xc0] sm:$0x7f]
  %v420 = vld [vmem:[%s1 + $0xc8] sm:$0x7f]
  %v421 = vld [vmem:[%s1 + $0xd0] sm:$0x7f]
  %v422 = vld [vmem:[%s1 + $0xd8] sm:$0x7f]
  %v423 = vld [vmem:[%s1 + $0xe0] sm:$0x7f]
  %v424 = vld [vmem:[%s1 + $0xe8] sm:$0x7f]
  %v425 = vld [vmem:[%s1 + $0xf0] sm:$0x7f]
  %v426 = vld [vmem:[%s1 + $0xf8] sm:$0x7f]
  %v427 = vld [vmem:[%s1 + $0x100] sm:$0x7f]
  %v428 = vld [vmem:[%s1 + $0x108] sm:$0x7f]
  %v429 = vld [vmem:[%s1 + $0x110] sm:$0x7f]
  %v430 = vld [vmem:[%s1 + $0x118] sm:$0x7f]
  %v431 = vld [vmem:[%s1 + $0x120] sm:$0x7f]
  %v432 = vld [vmem:[%s1 + $0x128] sm:$0x7f]
  %v433 = vld [vmem:[%s1 + $0x130] sm:$0x7f]
  %v434 = vld [vmem:[%s1 + $0x138] sm:$0x7f]
  %v435 = vld [vmem:[%s1 + $0x140] sm:$0x7f]
  %v436 = vld [vmem:[%s1 + $0x148] sm:$0x7f]
  %v437 = vld [vmem:[%s1 + $0x150] sm:$0x7f]
  %v438 = vld [vmem:[%s1 + $0x158] sm:$0x7f]
  %v439 = vld [vmem:[%s1 + $0x160] sm:$0x7f]
  %v440 = vld [vmem:[%s1 + $0x168] sm:$0x7f]
  %v441 = vld [vmem:[%s1 + $0x170] sm:$0x7f]
  %v442 = vld [vmem:[%s1 + $0x178] sm:$0x7f]
  %v443 = vld [vmem:[%s1 + $0x180] sm:$0x7f]
  %v444 = vld [vmem:[%s1 + $0x188] sm:$0x7f]
  %v445 = vld [vmem:[%s1 + $0x190] sm:$0x7f]
  %v446 = vld [vmem:[%s1 + $0x198] sm:$0x7f]
  %v447 = vld [vmem:[%s1 + $0x1a0] sm:$0x7f]
  %v448 = vld [vmem:[%s1 + $0x1a8] sm:$0x7f]
  %v449 = vld [vmem:[%s1 + $0x1b0] sm:$0x7f]
  %v450 = vld [vmem:[%s1 + $0x1b8] sm:$0x7f]
  %v451 = vld [vmem:[%s1 + $0x1c0] sm:$0x7f]
  %v452 = vld [vmem:[%s1 + $0x1c8] sm:$0x7f]
  %v453 = vld [vmem:[%s1 + $0x1d0] sm:$0x7f]
  %v454 = vld [vmem:[%s1 + $0x1d8] sm:$0x7f]
  %v455 = vld [vmem:[%s1 + $0x1e0] sm:$0x7f]
  %v456 = vld [vmem:[%s1 + $0x1e8] sm:$0x7f]
  %v457 = vld [vmem:[%s1 + $0x1f0] sm:$0x7f]
  %v458 = vld [vmem:[%s1 + $0x1f8] sm:$0x7f]
  %v459 = vld [vmem:[%s1 + $0x200] sm:$0x7f]
  %v460 = vld [vmem:[%s1 + $0x208] sm:$0x7f]
  %v461 = vld [vmem:[%s1 + $0x210] sm:$0x7f]
  %v462 = vld [vmem:[%s1 + $0x218] sm:$0x7f]
  %v463 = vld [vmem:[%s1 + $0x220] sm:$0x7f]
  %v464 = vld [vmem:[%s1 + $0x228] sm:$0x7f]
  %v465 = vld [vmem:[%s1 + $0x230] sm:$0x7f]
  %v466 = vld [vmem:[%s1 + $0x238] sm:$0x7f]
  %v467 = vld [vmem:[%s1 + $0x240] sm:$0x7f]
  %v468 = vld [vmem:[%s1 + $0x248] sm:$0x7f]
  %v469 = vld [vmem:[%s1 + $0x250] sm:$0x7f]
  %v470 = vld [vmem:[%s1 + $0x258] sm:$0x7f]
  %v471 = vld [vmem:[%s1 + $0x260] sm:$0x7f]
  %v472 = vld [vmem:[%s1 + $0x268] sm:$0x7f]
  %v473 = vld [vmem:[%s1 + $0x270] sm:$0x7f]
  %v474 = vld [vmem:[%s1 + $0x278] sm:$0x7f]
  %v475 = vld [vmem:[%s1 + $0x280] sm:$0x7f]
  %v476 = vld [vmem:[%s1 + $0x288] sm:$0x7f]
  %v477 = vld [vmem:[%s1 + $0x290] sm:$0x7f]
  %v478 = vld [vmem:[%s1 + $0x298] sm:$0x7f]
  %v479 = vld [vmem:[%s1 + $0x2a0] sm:$0x7f]
  %v480 = vld [vmem:[%s1 + $0x2a8] sm:$0x7f]
  %v481 = vld [vmem:[%s1 + $0x2b0] sm:$0x7f]
  %v482 = vld [vmem:[%s1 + $0x2b8] sm:$0x7f]
  %v483 = vld [vmem:[%s1 + $0x2c0] sm:$0x7f]
  %v484 = vld [vmem:[%s1 + $0x2c8] sm:$0x7f]
  %v485 = vld [vmem:[%s1 + $0x2d0] sm:$0x7f]
  %v486 = vld [vmem:[%s1 + $0x2d8] sm:$0x7f]
  %v487 = vld [vmem:[%s1 + $0x2e0] sm:$0x7f]
  %v488 = vld [vmem:[%s1 + $0x2e8] sm:$0x7f]
  %v489 = vld [vmem:[%s1 + $0x2f0] sm:$0x7f]
  %v490 = vld [vmem:[%s1 + $0x2f8] sm:$0x7f]
  %v491 = vld [vmem:[%s1 + $0x300] sm:$0x7f]
  %v492 = vld [vmem:[%s1 + $0x308] sm:$0x7f]
  %v493 = vld [vmem:[%s1 + $0x310] sm:$0x7f]
  %v494 = vld [vmem:[%s1 + $0x318] sm:$0x7f]
  %v495 = vld [vmem:[%s1 + $0x320] sm:$0x7f]
  %v496 = vld [vmem:[%s1 + $0x328] sm:$0x7f]
  %v497 = vld [vmem:[%s1 + $0x330] sm:$0x7f]
  %v498 = vld [vmem:[%s1 + $0x338] sm:$0x7f]
  %v499 = vld [vmem:[%s1 + $0x340] sm:$0x7f]
  %v500 = vld [vmem:[%s1 + $0x348] sm:$0x7f]
  %v501 = vld [vmem:[%s1 + $0x350] sm:$0x7f]
  %v502 = vld [vmem:[%s1 + $0x358] sm:$0x7f]
  %v503 = vld [vmem:[%s1 + $0x360] sm:$0x7f]
  %v504 = vld [vmem:[%s1 + $0x368] sm:$0x7f]
  %v505 = vld [vmem:[%s1 + $0x370] sm:$0x7f]
  %v506 = vld [vmem:[%s1 + $0x378] sm:$0x7f]
  %v507 = vld [vmem:[%s1 + $0x380] sm:$0x7f]
  %v508 = vld [vmem:[%s1 + $0x388] sm:$0x7f]
  %v509 = vld [vmem:[%s1 + $0x390] sm:$0x7f]
  %v510 = vld [vmem:[%s1 + $0x398] sm:$0x7f]
  %v511 = vld [vmem:[%s1 + $0x3a0] sm:$0x7f]
  %v512 = vld [vmem:[%s1 + $0x3a8] sm:$0x7f]
  %v513 = vld [vmem:[%s1 + $0x3b0] sm:$0x7f]
  %v514 = vld [vmem:[%s1 + $0x3b8] sm:$0x7f]
  %v515 = vld [vmem:[%s1 + $0x3c0] sm:$0x7f]
  %v516 = vld [vmem:[%s1 + $0x3c8] sm:$0x7f]
  %v517 = vld [vmem:[%s1 + $0x3d0] sm:$0x7f]
  %v518 = vld [vmem:[%s1 + $0x3d8] sm:$0x7f]
  %v519 = vld [vmem:[%s1 + $0x3e0] sm:$0x7f]
  %v520 = vld [vmem:[%s1 + $0x3e8] sm:$0x7f]
  %v521 = vld [vmem:[%s1 + $0x3f0] sm:$0x7f]
  %v522 = vld [vmem:[%s1 + $0x3f8] sm:$0x7f]
  %v523 = vld [vmem:[%s1 + $0x400] sm:$0x7f]
  %v524 = vld [vmem:[%s1 + $0x408] sm:$0x7f]
  %v525 = vld [vmem:[%s1 + $0x410] sm:$0x7f]
  %v526 = vld [vmem:[%s1 + $0x418] sm:$0x7f]
  %v527 = vld [vmem:[%s1 + $0x420] sm:$0x7f]
  %v528 = vld [vmem:[%s1 + $0x428] sm:$0x7f]
  %v529 = vld [vmem:[%s1 + $0x430] sm:$0x7f]
  %v530 = vld [vmem:[%s1 + $0x438] sm:$0x7f]
  %v531 = vld [vmem:[%s1 + $0x440] sm:$0x7f]
  %v532 = vld [vmem:[%s1 + $0x448] sm:$0x7f]
  %v533 = vld [vmem:[%s1 + $0x450] sm:$0x7f]
  %v534 = vld [vmem:[%s1 + $0x458] sm:$0x7f]
  %v535 = vld [vmem:[%s1 + $0x460] sm:$0x7f]
  %v536 = vld [vmem:[%s1 + $0x468] sm:$0x7f]
  %v537 = vld [vmem:[%s1 + $0x470] sm:$0x7f]
  %v538 = vld [vmem:[%s1 + $0x478] sm:$0x7f]
  %v539 = vld [vmem:[%s1 + $0x480] sm:$0x7f]
  %v540 = vld [vmem:[%s1 + $0x488] sm:$0x7f]
  %v541 = vld [vmem:[%s1 + $0x490] sm:$0x7f]
  %v542 = vld [vmem:[%s1 + $0x498] sm:$0x7f]
  %v543 = vld [vmem:[%s1 + $0x4a0] sm:$0x7f]
  %v544 = vld [vmem:[%s1 + $0x4a8] sm:$0x7f]
  %v545 = vld [vmem:[%s1 + $0x4b0] sm:$0x7f]
  %v546 = vld [vmem:[%s1 + $0x4b8] sm:$0x7f]
  %v547 = vld [vmem:[%s1 + $0x4c0] sm:$0x7f]
  %v548 = vld [vmem:[%s1 + $0x4c8] sm:$0x7f]
  %v549 = vld [vmem:[%s1 + $0x4d0] sm:$0x7f]
  %v550 = vld [vmem:[%s1 + $0x4d8] sm:$0x7f]
  %v551 = vld [vmem:[%s1 + $0x4e0] sm:$0x7f]
  %v552 = vld [vmem:[%s1 + $0x4e8] sm:$0x7f]
  %v553 = vld [vmem:[%s1 + $0x4f0] sm:$0x7f]
  %v554 = vld [vmem:[%s1 + $0x4f8] sm:$0x7f]
  %v555 = vld [vmem:[%s1 + $0x500] sm:$0x7f]
  %v556 = vld [vmem:[%s1 + $0x508] sm:$0x7f]
  %v557 = vld [vmem:[%s1 + $0x510] sm:$0x7f]
  %v558 = vld [vmem:[%s1 + $0x518] sm:$0x7f]
  %v559 = vld [vmem:[%s1 + $0x520] sm:$0x7f]
  %v560 = vld [vmem:[%s1 + $0x528] sm:$0x7f]
  %v561 = vld [vmem:[%s1 + $0x530] sm:$0x7f]
  %v562 = vld [vmem:[%s1 + $0x538] sm:$0x7f]
  %v563 = vld [vmem:[%s1 + $0x540] sm:$0x7f]
  %v564 = vld [vmem:[%s1 + $0x548] sm:$0x7f]
  %v565 = vld [vmem:[%s1 + $0x550] sm:$0x7f]
  %v566 = vld [vmem:[%s1 + $0x558] sm:$0x7f]
  %v567 = vld [vmem:[%s1 + $0x560] sm:$0x7f]
  %v568 = vld [vmem:[%s1 + $0x568] sm:$0x7f]
  %v569 = vld [vmem:[%s1 + $0x570] sm:$0x7f]
  %v570 = vld [vmem:[%s1 + $0x578] sm:$0x7f]
  %v571 = vld [vmem:[%s1 + $0x580] sm:$0x7f]
  %v572 = vld [vmem:[%s1 + $0x588] sm:$0x7f]
  %v573 = vld [vmem:[%s1 + $0x590] sm:$0x7f]
  %v574 = vld [vmem:[%s1 + $0x598] sm:$0x7f]
  %v575 = vld [vmem:[%s1 + $0x5a0] sm:$0x7f]
  %v576 = vld [vmem:[%s1 + $0x5a8] sm:$0x7f]
  %v577 = vld [vmem:[%s1 + $0x5b0] sm:$0x7f]
  %v578 = vld [vmem:[%s1 + $0x5b8] sm:$0x7f]
  %v579 = vld [vmem:[%s1 + $0x5c0] sm:$0x7f]
  %v580 = vld [vmem:[%s1 + $0x5c8] sm:$0x7f]
  %v581 = vld [vmem:[%s1 + $0x5d0] sm:$0x7f]
  %v582 = vld [vmem:[%s1 + $0x5d8] sm:$0x7f]
  %v583 = vld [vmem:[%s1 + $0x5e0] sm:$0x7f]
  %v584 = vld [vmem:[%s1 + $0x5e8] sm:$0x7f]
  %v585 = vld [vmem:[%s1 + $0x5f0] sm:$0x7f]
  %v586 = vld [vmem:[%s1 + $0x5f8] sm:$0x7f]
  %v587 = vld [vmem:[%s1 + $0x600] sm:$0x7f]
  %v588 = vld [vmem:[%s1 + $0x608] sm:$0x7f]
  %v589 = vld [vmem:[%s1 + $0x610] sm:$0x7f]
  %v590 = vld [vmem:[%s1 + $0x618] sm:$0x7f]
  %v591 = vld [vmem:[%s1 + $0x620] sm:$0x7f]
  %v592 = vld [vmem:[%s1 + $0x628] sm:$0x7f]
  %v593 = vld [vmem:[%s1 + $0x630] sm:$0x7f]
  %v594 = vld [vmem:[%s1 + $0x638] sm:$0x7f]
  %v595 = vld [vmem:[%s1 + $0x640] sm:$0x7f]
  %v596 = vld [vmem:[%s1 + $0x648] sm:$0x7f]
  %v597 = vld [vmem:[%s1 + $0x650] sm:$0x7f]
  %v598 = vld [vmem:[%s1 + $0x658] sm:$0x7f]
  %v599 = vld [vmem:[%s1 + $0x660] sm:$0x7f]
  %v600 = vld [vmem:[%s1 + $0x668] sm:$0x7f]
  %v601 = vld [vmem:[%s1 + $0x670] sm:$0x7f]
  %v602 = vld [vmem:[%s1 + $0x678] sm:$0x7f]
  %v603 = vld [vmem:[%s1 + $0x680] sm:$0x7f]
  %v604 = vld [vmem:[%s1 + $0x688] sm:$0x7f]
  %v605 = vld [vmem:[%s1 + $0x690] sm:$0x7f]
  %v606 = vld [vmem:[%s1 + $0x698] sm:$0x7f]
  %v607 = vld [vmem:[%s1 + $0x6a0] sm:$0x7f]
  %v608 = vld [vmem:[%s1 + $0x6a8] sm:$0x7f]
  %v609 = vld [vmem:[%s1 + $0x6b0] sm:$0x7f]
  %v610 = vld [vmem:[%s1 + $0x6b8] sm:$0x7f]
  %v611 = vld [vmem:[%s1 + $0x6c0] sm:$0x7f]
  %v612 = vld [vmem:[%s1 + $0x6c8] sm:$0x7f]
  %v613 = vld [vmem:[%s1 + $0x6d0] sm:$0x7f]
  %v614 = vld [vmem:[%s1 + $0x6d8] sm:$0x7f]
  %v615 = vld [vmem:[%s1 + $0x6e0] sm:$0x7f]
  %v616 = vld [vmem:[%s1 + $0x6e8] sm:$0x7f]
  %v617 = vld [vmem:[%s1 + $0x6f0] sm:$0x7f]
  %v618 = vld [vmem:[%s1 + $0x6f8] sm:$0x7f]
  %v619 = vld [vmem:[%s1 + $0x700] sm:$0x7f]
  %v620 = vld [vmem:[%s1 + $0x708] sm:$0x7f]
  %v621 = vld [vmem:[%s1 + $0x710] sm:$0x7f]
  %v622 = vld [vmem:[%s1 + $0x718] sm:$0x7f]
  %v623 = vld [vmem:[%s1 + $0x720] sm:$0x7f]
  %v624 = vld [vmem:[%s1 + $0x728] sm:$0x7f]
  %v625 = vld [vmem:[%s1 + $0x730] sm:$0x7f]
  %v626 = vld [vmem:[%s1 + $0x738] sm:$0x7f]
  %v627 = vld [vmem:[%s1 + $0x740] sm:$0x7f]
  %v628 = vld [vmem:[%s1 + $0x748] sm:$0x7f]
  %v629 = vld [vmem:[%s1 + $0x750] sm:$0x7f]
  %v630 = vld [vmem:[%s1 + $0x758] sm:$0x7f]
  %v631 = vld [vmem:[%s1 + $0x760] sm:$0x7f]
  %v632 = vld [vmem:[%s1 + $0x768] sm:$0x7f]
  %v633 = vld [vmem:[%s1 + $0x770] sm:$0x7f]
  %v634 = vld [vmem:[%s1 + $0x778] sm:$0x7f]
  %v635 = vld [vmem:[%s1 + $0x780] sm:$0x7f]
  %v636 = vld [vmem:[%s1 + $0x788] sm:$0x7f]
  %v637 = vld [vmem:[%s1 + $0x790] sm:$0x7f]
  %v638 = vld [vmem:[%s1 + $0x798] sm:$0x7f]
  %v639 = vld [vmem:[%s1 + $0x7a0] sm:$0x7f]
  %v640 = vld [vmem:[%s1 + $0x7a8] sm:$0x7f]
  %v641 = vld [vmem:[%s1 + $0x7b0] sm:$0x7f]
  %v642 = vld [vmem:[%s1 + $0x7b8] sm:$0x7f]
  %v643 = vld [vmem:[%s1 + $0x7c0] sm:$0x7f]
  %v644 = vld [vmem:[%s1 + $0x7c8] sm:$0x7f]
  %v645 = vld [vmem:[%s1 + $0x7d0] sm:$0x7f]
  %v646 = vld [vmem:[%s1 + $0x7d8] sm:$0x7f]
  %v647 = vld [vmem:[%s1 + $0x7e0] sm:$0x7f]
  %v648 = vld [vmem:[%s1 + $0x7e8] sm:$0x7f]
  %v649 = vld [vmem:[%s1 + $0x7f0] sm:$0x7f]
  %v650 = vld [vmem:[%s1 + $0x7f8] sm:$0x7f]
  %v651 = vld [vmem:[%s1 + $0x800] sm:$0x7f]
  %v652 = vld [vmem:[%s1 + $0x808] sm:$0x7f]
  %v653 = vld [vmem:[%s1 + $0x810] sm:$0x7f]
  %v654 = vld [vmem:[%s1 + $0x818] sm:$0x7f]
  %v655 = vld [vmem:[%s1 + $0x820] sm:$0x7f]
  %v656 = vld [vmem:[%s1 + $0x828] sm:$0x7f]
  %v657 = vld [vmem:[%s1 + $0x830] sm:$0x7f]
  %v658 = vld [vmem:[%s1 + $0x838] sm:$0x7f]
  %v659 = vld [vmem:[%s1 + $0x840] sm:$0x7f]
  %v660 = vld [vmem:[%s1 + $0x848] sm:$0x7f]
  %v661 = vld [vmem:[%s1 + $0x850] sm:$0x7f]
  %v662 = vld [vmem:[%s1 + $0x858] sm:$0x7f]
  %v663 = vld [vmem:[%s1 + $0x860] sm:$0x7f]
  %v664 = vld [vmem:[%s1 + $0x868] sm:$0x7f]
  %v665 = vld [vmem:[%s1 + $0x870] sm:$0x7f]
  %v666 = vld [vmem:[%s1 + $0x878] sm:$0x7f]
  %v667 = vld [vmem:[%s1 + $0x880] sm:$0x7f]
  %v668 = vld [vmem:[%s1 + $0x888] sm:$0x7f]
  %v669 = vld [vmem:[%s1 + $0x890] sm:$0x7f]
  %v670 = vld [vmem:[%s1 + $0x898] sm:$0x7f]
  %v671 = vld [vmem:[%s1 + $0x8a0] sm:$0x7f]
  %v672 = vld [vmem:[%s1 + $0x8a8] sm:$0x7f]
  %v673 = vld [vmem:[%s1 + $0x8b0] sm:$0x7f]
  %v674 = vld [vmem:[%s1 + $0x8b8] sm:$0x7f]
  %v675 = vld [vmem:[%s1 + $0x8c0] sm:$0x7f]
  %v676 = vld [vmem:[%s1 + $0x8c8] sm:$0x7f]
  %v677 = vld [vmem:[%s1 + $0x8d0] sm:$0x7f]
  %v678 = vld [vmem:[%s1 + $0x8d8] sm:$0x7f]
  %v679 = vld [vmem:[%s1 + $0x8e0] sm:$0x7f]
  %v680 = vld [vmem:[%s1 + $0x8e8] sm:$0x7f]
  %v681 = vld [vmem:[%s1 + $0x8f0] sm:$0x7f]
  %v682 = vld [vmem:[%s1 + $0x8f8] sm:$0x7f]
  %v683 = vld [vmem:[%s1 + $0x900] sm:$0x7f]
  %v684 = vld [vmem:[%s1 + $0x908] sm:$0x7f]
  %v685 = vld [vmem:[%s1 + $0x910] sm:$0x7f]
  %v686 = vld [vmem:[%s1 + $0x918] sm:$0x7f]
  %v687 = vld [vmem:[%s1 + $0x920] sm:$0x7f]
  %v688 = vld [vmem:[%s1 + $0x928] sm:$0x7f]
  %v689 = vld [vmem:[%s1 + $0x930] sm:$0x7f]
  %v690 = vld [vmem:[%s1 + $0x938] sm:$0x7f]
  %v691 = vld [vmem:[%s1 + $0x940] sm:$0x7f]
  %v692 = vld [vmem:[%s1 + $0x948] sm:$0x7f]
  %v693 = vld [vmem:[%s1 + $0x950] sm:$0x7f]
  %v694 = vld [vmem:[%s1 + $0x958] sm:$0x7f]
  %v695 = vld [vmem:[%s1 + $0x960] sm:$0x7f]
  %v696 = vld [vmem:[%s1 + $0x968] sm:$0x7f]
  %v697 = vld [vmem:[%s1 + $0x970] sm:$0x7f]
  %v698 = vld [vmem:[%s1 + $0x978] sm:$0x7f]
  %v699 = vld [vmem:[%s1 + $0x980] sm:$0x7f]
  %v700 = vld [vmem:[%s1 + $0x988] sm:$0x7f]
  %v701 = vld [vmem:[%s1 + $0x990] sm:$0x7f]
  %v702 = vld [vmem:[%s1 + $0x998] sm:$0x7f]
  %v703 = vld [vmem:[%s1 + $0x9a0] sm:$0x7f]
  %v704 = vld [vmem:[%s1 + $0x9a8] sm:$0x7f]
  %v705 = vld [vmem:[%s1 + $0x9b0] sm:$0x7f]
  %v706 = vld [vmem:[%s1 + $0x9b8] sm:$0x7f]
  %v707 = vld [vmem:[%s1 + $0x9c0] sm:$0x7f]
  %v708 = vld [vmem:[%s1 + $0x9c8] sm:$0x7f]
  %v709 = vld [vmem:[%s1 + $0x9d0] sm:$0x7f]
  %v710 = vld [vmem:[%s1 + $0x9d8] sm:$0x7f]
  %v711 = vld [vmem:[%s1 + $0x9e0] sm:$0x7f]
  %v712 = vld [vmem:[%s1 + $0x9e8] sm:$0x7f]
  %v713 = vld [vmem:[%s1 + $0x9f0] sm:$0x7f]
  %v714 = vld [vmem:[%s1 + $0x9f8] sm:$0x7f]
  %v715 = vld [vmem:[%s1 + $0xa00] sm:$0x7f]
  %v716 = vld [vmem:[%s1 + $0xa08] sm:$0x7f]
  %v717 = vld [vmem:[%s1 + $0xa10] sm:$0x7f]
  %v718 = vld [vmem:[%s1 + $0xa18] sm:$0x7f]
  %v719 = vld [vmem:[%s1 + $0xa20] sm:$0x7f]
  %v720 = vld [vmem:[%s1 + $0xa28] sm:$0x7f]
  %v721 = vld [vmem:[%s1 + $0xa30] sm:$0x7f]
  %v722 = vld [vmem:[%s1 + $0xa38] sm:$0x7f]
  %v723 = vld [vmem:[%s1 + $0xa40] sm:$0x7f]
  %v724 = vld [vmem:[%s1 + $0xa48] sm:$0x7f]
  %v725 = vld [vmem:[%s1 + $0xa50] sm:$0x7f]
  %v726 = vld [vmem:[%s1 + $0xa58] sm:$0x7f]
  %v727 = vld [vmem:[%s1 + $0xa60] sm:$0x7f]
  %v728 = vld [vmem:[%s1 + $0xa68] sm:$0x7f]
  %v729 = vld [vmem:[%s1 + $0xa70] sm:$0x7f]
  %v730 = vld [vmem:[%s1 + $0xa78] sm:$0x7f]
  %v731 = vld [vmem:[%s1 + $0xa80] sm:$0x7f]
  %v732 = vld [vmem:[%s1 + $0xa88] sm:$0x7f]
  %v733 = vld [vmem:[%s1 + $0xa90] sm:$0x7f]
  %v734 = vld [vmem:[%s1 + $0xa98] sm:$0x7f]
  %v735 = vld [vmem:[%s1 + $0xaa0] sm:$0x7f]
  %v736 = vld [vmem:[%s1 + $0xaa8] sm:$0x7f]
  %v737 = vld [vmem:[%s1 + $0xab0] sm:$0x7f]
  %v738 = vld [vmem:[%s1 + $0xab8] sm:$0x7f]
  %v739 = vld [vmem:[%s1 + $0xac0] sm:$0x7f]
  %v740 = vld [vmem:[%s1 + $0xac8] sm:$0x7f]
  %v741 = vld [vmem:[%s1 + $0xad0] sm:$0x7f]
  %v742 = vld [vmem:[%s1 + $0xad8] sm:$0x7f]
  %v743 = vld [vmem:[%s1 + $0xae0] sm:$0x7f]
  %v744 = vld [vmem:[%s1 + $0xae8] sm:$0x7f]
  %v745 = vld [vmem:[%s1 + $0xaf0] sm:$0x7f]
  %v746 = vld [vmem:[%s1 + $0xaf8] sm:$0x7f]
  %v747 = vld [vmem:[%s1 + $0xb00] sm:$0x7f]
  %v748 = vld [vmem:[%s1 + $0xb08] sm:$0x7f]
  %v749 = vld [vmem:[%s1 + $0xb10] sm:$0x7f]
  %v750 = vld [vmem:[%s1 + $0xb18] sm:$0x7f]
  %v751 = vld [vmem:[%s1 + $0xb20] sm:$0x7f]
  %v752 = vld [vmem:[%s1 + $0xb28] sm:$0x7f]
  %v753 = vld [vmem:[%s1 + $0xb30] sm:$0x7f]
  %v754 = vld [vmem:[%s1 + $0xb38] sm:$0x7f]
  %v755 = vld [vmem:[%s1 + $0xb40] sm:$0x7f]
  %v756 = vld [vmem:[%s1 + $0xb48] sm:$0x7f]
  %v757 = vld [vmem:[%s1 + $0xb50] sm:$0x7f]
  %v758 = vld [vmem:[%s1 + $0xb58] sm:$0x7f]
  %v759 = vld [vmem:[%s1 + $0xb60] sm:$0x7f]
  %v760 = vld [vmem:[%s1 + $0xb68] sm:$0x7f]
  %v761 = vld [vmem:[%s1 + $0xb70] sm:$0x7f]
  %v762 = vld [vmem:[%s1 + $0xb78] sm:$0x7f]
  %v763 = vld [vmem:[%s1 + $0xb80] sm:$0x7f]
  %v764 = vld [vmem:[%s1 + $0xb88] sm:$0x7f]
  %v765 = vld [vmem:[%s1 + $0xb90] sm:$0x7f]
  %v766 = vld [vmem:[%s1 + $0xb98] sm:$0x7f]
  %v767 = vld [vmem:[%s1 + $0xba0] sm:$0x7f]
  %v768 = vld [vmem:[%s1 + $0xba8] sm:$0x7f]
  %v769 = vld [vmem:[%s1 + $0xbb0] sm:$0x7f]
  %v770 = vld [vmem:[%s1 + $0xbb8] sm:$0x7f]
  %v771 = vld [vmem:[%s1 + $0xbc0] sm:$0x7f]
  %v772 = vld [vmem:[%s1 + $0xbc8] sm:$0x7f]
  %v773 = vld [vmem:[%s1 + $0xbd0] sm:$0x7f]
  %v774 = vld [vmem:[%s1 + $0xbd8] sm:$0x7f]
  %v775 = vld [vmem:[%s1 + $0xbe0] sm:$0x7f]
  %v776 = vld [vmem:[%s1 + $0xbe8] sm:$0x7f]
  %v777 = vld [vmem:[%s1 + $0xbf0] sm:$0x7f]
  %v778 = vld [vmem:[%s1 + $0xbf8] sm:$0x7f]
  %v779 = vadd.f32 %v11, %v395
  %v780 = vadd.f32 %v12, %v396
  %v781 = vadd.f32 %v13, %v397
  %v782 = vadd.f32 %v14, %v398
  %v783 = vadd.f32 %v15, %v399
  %v784 = vadd.f32 %v16, %v400
  %v785 = vadd.f32 %v17, %v401
  %v786 = vadd.f32 %v18, %v402
  %v787 = vadd.f32 %v19, %v403
  %v788 = vadd.f32 %v20, %v404
  %v789 = vadd.f32 %v21, %v405
  %v790 = vadd.f32 %v22, %v406
  %v791 = vadd.f32 %v23, %v407
  %v792 = vadd.f32 %v24, %v408
  %v793 = vadd.f32 %v25, %v409
  %v794 = vadd.f32 %v26, %v410
  %v795 = vadd.f32 %v27, %v411
  %v796 = vadd.f32 %v28, %v412
  %v797 = vadd.f32 %v29, %v413
  %v798 = vadd.f32 %v30, %v414
  %v799 = vadd.f32 %v31, %v415
  %v800 = vadd.f32 %v32, %v416
  %v801 = vadd.f32 %v33, %v417
  %v802 = vadd.f32 %v34, %v418
  %v803 = vadd.f32 %v35, %v419
  %v804 = vadd.f32 %v36, %v420
  %v805 = vadd.f32 %v37, %v421
  %v806 = vadd.f32 %v38, %v422
  %v807 = vadd.f32 %v39, %v423
  %v808 = vadd.f32 %v40, %v424
  %v809 = vadd.f32 %v41, %v425
  %v810 = vadd.f32 %v42, %v426
  %v811 = vadd.f32 %v43, %v427
  %v812 = vadd.f32 %v44, %v428
  %v813 = vadd.f32 %v45, %v429
  %v814 = vadd.f32 %v46, %v430
  %v815 = vadd.f32 %v47, %v431
  %v816 = vadd.f32 %v48, %v432
  %v817 = vadd.f32 %v49, %v433
  %v818 = vadd.f32 %v50, %v434
  %v819 = vadd.f32 %v51, %v435
  %v820 = vadd.f32 %v52, %v436
  %v821 = vadd.f32 %v53, %v437
  %v822 = vadd.f32 %v54, %v438
  %v823 = vadd.f32 %v55, %v439
  %v824 = vadd.f32 %v56, %v440
  %v825 = vadd.f32 %v57, %v441
  %v826 = vadd.f32 %v58, %v442
  %v827 = vadd.f32 %v59, %v443
  %v828 = vadd.f32 %v60, %v444
  %v829 = vadd.f32 %v61, %v445
  %v830 = vadd.f32 %v62, %v446
  %v831 = vadd.f32 %v63, %v447
  %v832 = vadd.f32 %v64, %v448
  %v833 = vadd.f32 %v65, %v449
  %v834 = vadd.f32 %v66, %v450
  %v835 = vadd.f32 %v67, %v451
  %v836 = vadd.f32 %v68, %v452
  %v837 = vadd.f32 %v69, %v453
  %v838 = vadd.f32 %v70, %v454
  %v839 = vadd.f32 %v71, %v455
  %v840 = vadd.f32 %v72, %v456
  %v841 = vadd.f32 %v73, %v457
  %v842 = vadd.f32 %v74, %v458
  %v843 = vadd.f32 %v75, %v459
  %v844 = vadd.f32 %v76, %v460
  %v845 = vadd.f32 %v77, %v461
  %v846 = vadd.f32 %v78, %v462
  %v847 = vadd.f32 %v79, %v463
  %v848 = vadd.f32 %v80, %v464
  %v849 = vadd.f32 %v81, %v465
  %v850 = vadd.f32 %v82, %v466
  %v851 = vadd.f32 %v83, %v467
  %v852 = vadd.f32 %v84, %v468
  %v853 = vadd.f32 %v85, %v469
  %v854 = vadd.f32 %v86, %v470
  %v855 = vadd.f32 %v87, %v471
  %v856 = vadd.f32 %v88, %v472
  %v857 = vadd.f32 %v89, %v473
  %v858 = vadd.f32 %v90, %v474
  %v859 = vadd.f32 %v91, %v475
  %v860 = vadd.f32 %v92, %v476
  %v861 = vadd.f32 %v93, %v477
  %v862 = vadd.f32 %v94, %v478
  %v863 = vadd.f32 %v95, %v479
  %v864 = vadd.f32 %v96, %v480
  %v865 = vadd.f32 %v97, %v481
  %v866 = vadd.f32 %v98, %v482
  %v867 = vadd.f32 %v99, %v483
  %v868 = vadd.f32 %v100, %v484
  %v869 = vadd.f32 %v101, %v485
  %v870 = vadd.f32 %v102, %v486
  %v871 = vadd.f32 %v103, %v487
  %v872 = vadd.f32 %v104, %v488
  %v873 = vadd.f32 %v105, %v489
  %v874 = vadd.f32 %v106, %v490
  %v875 = vadd.f32 %v107, %v491
  %v876 = vadd.f32 %v108, %v492
  %v877 = vadd.f32 %v109, %v493
  %v878 = vadd.f32 %v110, %v494
  %v879 = vadd.f32 %v111, %v495
  %v880 = vadd.f32 %v112, %v496
  %v881 = vadd.f32 %v113, %v497
  %v882 = vadd.f32 %v114, %v498
  %v883 = vadd.f32 %v115, %v499
  %v884 = vadd.f32 %v116, %v500
  %v885 = vadd.f32 %v117, %v501
  %v886 = vadd.f32 %v118, %v502
  %v887 = vadd.f32 %v119, %v503
  %v888 = vadd.f32 %v120, %v504
  %v889 = vadd.f32 %v121, %v505
  %v890 = vadd.f32 %v122, %v506
  %v891 = vadd.f32 %v123, %v507
  %v892 = vadd.f32 %v124, %v508
  %v893 = vadd.f32 %v125, %v509
  %v894 = vadd.f32 %v126, %v510
  %v895 = vadd.f32 %v127, %v511
  %v896 = vadd.f32 %v128, %v512
  %v897 = vadd.f32 %v129, %v513
  %v898 = vadd.f32 %v130, %v514
  %v899 = vadd.f32 %v131, %v515
  %v900 = vadd.f32 %v132, %v516
  %v901 = vadd.f32 %v133, %v517
  %v902 = vadd.f32 %v134, %v518
  %v903 = vadd.f32 %v135, %v519
  %v904 = vadd.f32 %v136, %v520
  %v905 = vadd.f32 %v137, %v521
  %v906 = vadd.f32 %v138, %v522
  %v907 = vadd.f32 %v139, %v523
  %v908 = vadd.f32 %v140, %v524
  %v909 = vadd.f32 %v141, %v525
  %v910 = vadd.f32 %v142, %v526
  %v911 = vadd.f32 %v143, %v527
  %v912 = vadd.f32 %v144, %v528
  %v913 = vadd.f32 %v145, %v529
  %v914 = vadd.f32 %v146, %v530
  %v915 = vadd.f32 %v147, %v531
  %v916 = vadd.f32 %v148, %v532
  %v917 = vadd.f32 %v149, %v533
  %v918 = vadd.f32 %v150, %v534
  %v919 = vadd.f32 %v151, %v535
  %v920 = vadd.f32 %v152, %v536
  %v921 = vadd.f32 %v153, %v537
  %v922 = vadd.f32 %v154, %v538
  %v923 = vadd.f32 %v155, %v539
  %v924 = vadd.f32 %v156, %v540
  %v925 = vadd.f32 %v157, %v541
  %v926 = vadd.f32 %v158, %v542
  %v927 = vadd.f32 %v159, %v543
  %v928 = vadd.f32 %v160, %v544
  %v929 = vadd.f32 %v161, %v545
  %v930 = vadd.f32 %v162, %v546
  %v931 = vadd.f32 %v163, %v547
  %v932 = vadd.f32 %v164, %v548
  %v933 = vadd.f32 %v165, %v549
  %v934 = vadd.f32 %v166, %v550
  %v935 = vadd.f32 %v167, %v551
  %v936 = vadd.f32 %v168, %v552
  %v937 = vadd.f32 %v169, %v553
  %v938 = vadd.f32 %v170, %v554
  %v939 = vadd.f32 %v171, %v555
  %v940 = vadd.f32 %v172, %v556
  %v941 = vadd.f32 %v173, %v557
  %v942 = vadd.f32 %v174, %v558
  %v943 = vadd.f32 %v175, %v559
  %v944 = vadd.f32 %v176, %v560
  %v945 = vadd.f32 %v177, %v561
  %v946 = vadd.f32 %v178, %v562
  %v947 = vadd.f32 %v179, %v563
  %v948 = vadd.f32 %v180, %v564
  %v949 = vadd.f32 %v181, %v565
  %v950 = vadd.f32 %v182, %v566
  %v951 = vadd.f32 %v183, %v567
  %v952 = vadd.f32 %v184, %v568
  %v953 = vadd.f32 %v185, %v569
  %v954 = vadd.f32 %v186, %v570
  %v955 = vadd.f32 %v187, %v571
  %v956 = vadd.f32 %v188, %v572
  %v957 = vadd.f32 %v189, %v573
  %v958 = vadd.f32 %v190, %v574
  %v959 = vadd.f32 %v191, %v575
  %v960 = vadd.f32 %v192, %v576
  %v961 = vadd.f32 %v193, %v577
  %v962 = vadd.f32 %v194, %v578
  %v963 = vadd.f32 %v195, %v579
  %v964 = vadd.f32 %v196, %v580
  %v965 = vadd.f32 %v197, %v581
  %v966 = vadd.f32 %v198, %v582
  %v967 = vadd.f32 %v199, %v583
  %v968 = vadd.f32 %v200, %v584
  %v969 = vadd.f32 %v201, %v585
  %v970 = vadd.f32 %v202, %v586
  %v971 = vadd.f32 %v203, %v587
  %v972 = vadd.f32 %v204, %v588
  %v973 = vadd.f32 %v205, %v589
  %v974 = vadd.f32 %v206, %v590
  %v975 = vadd.f32 %v207, %v591
  %v976 = vadd.f32 %v208, %v592
  %v977 = vadd.f32 %v209, %v593
  %v978 = vadd.f32 %v210, %v594
  %v979 = vadd.f32 %v211, %v595
  %v980 = vadd.f32 %v212, %v596
  %v981 = vadd.f32 %v213, %v597
  %v982 = vadd.f32 %v214, %v598
  %v983 = vadd.f32 %v215, %v599
  %v984 = vadd.f32 %v216, %v600
  %v985 = vadd.f32 %v217, %v601
  %v986 = vadd.f32 %v218, %v602
  %v987 = vadd.f32 %v219, %v603
  %v988 = vadd.f32 %v220, %v604
  %v989 = vadd.f32 %v221, %v605
  %v990 = vadd.f32 %v222, %v606
  %v991 = vadd.f32 %v223, %v607
  %v992 = vadd.f32 %v224, %v608
  %v993 = vadd.f32 %v225, %v609
  %v994 = vadd.f32 %v226, %v610
  %v995 = vadd.f32 %v227, %v611
  %v996 = vadd.f32 %v228, %v612
  %v997 = vadd.f32 %v229, %v613
  %v998 = vadd.f32 %v230, %v614
  %v999 = vadd.f32 %v231, %v615
  %v1000 = vadd.f32 %v232, %v616
  %v1001 = vadd.f32 %v233, %v617
  %v1002 = vadd.f32 %v234, %v618
  %v1003 = vadd.f32 %v235, %v619
  %v1004 = vadd.f32 %v236, %v620
  %v1005 = vadd.f32 %v237, %v621
  %v1006 = vadd.f32 %v238, %v622
  %v1007 = vadd.f32 %v239, %v623
  %v1008 = vadd.f32 %v240, %v624
  %v1009 = vadd.f32 %v241, %v625
  %v1010 = vadd.f32 %v242, %v626
  %v1011 = vadd.f32 %v243, %v627
  %v1012 = vadd.f32 %v244, %v628
  %v1013 = vadd.f32 %v245, %v629
  %v1014 = vadd.f32 %v246, %v630
  %v1015 = vadd.f32 %v247, %v631
  %v1016 = vadd.f32 %v248, %v632
  %v1017 = vadd.f32 %v249, %v633
  %v1018 = vadd.f32 %v250, %v634
  %v1019 = vadd.f32 %v251, %v635
  %v1020 = vadd.f32 %v252, %v636
  %v1021 = vadd.f32 %v253, %v637
  %v1022 = vadd.f32 %v254, %v638
  %v1023 = vadd.f32 %v255, %v639
  %v1024 = vadd.f32 %v256, %v640
  %v1025 = vadd.f32 %v257, %v641
  %v1026 = vadd.f32 %v258, %v642
  %v1027 = vadd.f32 %v259, %v643
  %v1028 = vadd.f32 %v260, %v644
  %v1029 = vadd.f32 %v261, %v645
  %v1030 = vadd.f32 %v262, %v646
  %v1031 = vadd.f32 %v263, %v647
  %v1032 = vadd.f32 %v264, %v648
  %v1033 = vadd.f32 %v265, %v649
  %v1034 = vadd.f32 %v266, %v650
  %v1035 = vadd.f32 %v267, %v651
  %v1036 = vadd.f32 %v268, %v652
  %v1037 = vadd.f32 %v269, %v653
  %v1038 = vadd.f32 %v270, %v654
  %v1039 = vadd.f32 %v271, %v655
  %v1040 = vadd.f32 %v272, %v656
  %v1041 = vadd.f32 %v273, %v657
  %v1042 = vadd.f32 %v274, %v658
  %v1043 = vadd.f32 %v275, %v659
  %v1044 = vadd.f32 %v276, %v660
  %v1045 = vadd.f32 %v277, %v661
  %v1046 = vadd.f32 %v278, %v662
  %v1047 = vadd.f32 %v279, %v663
  %v1048 = vadd.f32 %v280, %v664
  %v1049 = vadd.f32 %v281, %v665
  %v1050 = vadd.f32 %v282, %v666
  %v1051 = vadd.f32 %v283, %v667
  %v1052 = vadd.f32 %v284, %v668
  %v1053 = vadd.f32 %v285, %v669
  %v1054 = vadd.f32 %v286, %v670
  %v1055 = vadd.f32 %v287, %v671
  %v1056 = vadd.f32 %v288, %v672
  %v1057 = vadd.f32 %v289, %v673
  %v1058 = vadd.f32 %v290, %v674
  %v1059 = vadd.f32 %v291, %v675
  %v1060 = vadd.f32 %v292, %v676
  %v1061 = vadd.f32 %v293, %v677
  %v1062 = vadd.f32 %v294, %v678
  %v1063 = vadd.f32 %v295, %v679
  %v1064 = vadd.f32 %v296, %v680
  %v1065 = vadd.f32 %v297, %v681
  %v1066 = vadd.f32 %v298, %v682
  %v1067 = vadd.f32 %v299, %v683
  %v1068 = vadd.f32 %v300, %v684
  %v1069 = vadd.f32 %v301, %v685
  %v1070 = vadd.f32 %v302, %v686
  %v1071 = vadd.f32 %v303, %v687
  %v1072 = vadd.f32 %v304, %v688
  %v1073 = vadd.f32 %v305, %v689
  %v1074 = vadd.f32 %v306, %v690
  %v1075 = vadd.f32 %v307, %v691
  %v1076 = vadd.f32 %v308, %v692
  %v1077 = vadd.f32 %v309, %v693
  %v1078 = vadd.f32 %v310, %v694
  %v1079 = vadd.f32 %v311, %v695
  %v1080 = vadd.f32 %v312, %v696
  %v1081 = vadd.f32 %v313, %v697
  %v1082 = vadd.f32 %v314, %v698
  %v1083 = vadd.f32 %v315, %v699
  %v1084 = vadd.f32 %v316, %v700
  %v1085 = vadd.f32 %v317, %v701
  %v1086 = vadd.f32 %v318, %v702
  %v1087 = vadd.f32 %v319, %v703
  %v1088 = vadd.f32 %v320, %v704
  %v1089 = vadd.f32 %v321, %v705
  %v1090 = vadd.f32 %v322, %v706
  %v1091 = vadd.f32 %v323, %v707
  %v1092 = vadd.f32 %v324, %v708
  %v1093 = vadd.f32 %v325, %v709
  %v1094 = vadd.f32 %v326, %v710
  %v1095 = vadd.f32 %v327, %v711
  %v1096 = vadd.f32 %v328, %v712
  %v1097 = vadd.f32 %v329, %v713
  %v1098 = vadd.f32 %v330, %v714
  %v1099 = vadd.f32 %v331, %v715
  %v1100 = vadd.f32 %v332, %v716
  %v1101 = vadd.f32 %v333, %v717
  %v1102 = vadd.f32 %v334, %v718
  %v1103 = vadd.f32 %v335, %v719
  %v1104 = vadd.f32 %v336, %v720
  %v1105 = vadd.f32 %v337, %v721
  %v1106 = vadd.f32 %v338, %v722
  %v1107 = vadd.f32 %v339, %v723
  %v1108 = vadd.f32 %v340, %v724
  %v1109 = vadd.f32 %v341, %v725
  %v1110 = vadd.f32 %v342, %v726
  %v1111 = vadd.f32 %v343, %v727
  %v1112 = vadd.f32 %v344, %v728
  %v1113 = vadd.f32 %v345, %v729
  %v1114 = vadd.f32 %v346, %v730
  %v1115 = vadd.f32 %v347, %v731
  %v1116 = vadd.f32 %v348, %v732
  %v1117 = vadd.f32 %v349, %v733
  %v1118 = vadd.f32 %v350, %v734
  %v1119 = vadd.f32 %v351, %v735
  %v1120 = vadd.f32 %v352, %v736
  %v1121 = vadd.f32 %v353, %v737
  %v1122 = vadd.f32 %v354, %v738
  %v1123 = vadd.f32 %v355, %v739
  %v1124 = vadd.f32 %v356, %v740
  %v1125 = vadd.f32 %v357, %v741
  %v1126 = vadd.f32 %v358, %v742
  %v1127 = vadd.f32 %v359, %v743
  %v1128 = vadd.f32 %v360, %v744
  %v1129 = vadd.f32 %v361, %v745
  %v1130 = vadd.f32 %v362, %v746
  %v1131 = vadd.f32 %v363, %v747
  %v1132 = vadd.f32 %v364, %v748
  %v1133 = vadd.f32 %v365, %v749
  %v1134 = vadd.f32 %v366, %v750
  %v1135 = vadd.f32 %v367, %v751
  %v1136 = vadd.f32 %v368, %v752
  %v1137 = vadd.f32 %v369, %v753
  %v1138 = vadd.f32 %v370, %v754
  %v1139 = vadd.f32 %v371, %v755
  %v1140 = vadd.f32 %v372, %v756
  %v1141 = vadd.f32 %v373, %v757
  %v1142 = vadd.f32 %v374, %v758
  %v1143 = vadd.f32 %v375, %v759
  %v1144 = vadd.f32 %v376, %v760
  %v1145 = vadd.f32 %v377, %v761
  %v1146 = vadd.f32 %v378, %v762
  %v1147 = vadd.f32 %v379, %v763
  %v1148 = vadd.f32 %v380, %v764
  %v1149 = vadd.f32 %v381, %v765
  %v1150 = vadd.f32 %v382, %v766
  %v1151 = vadd.f32 %v383, %v767
  %v1152 = vadd.f32 %v384, %v768
  %v1153 = vadd.f32 %v385, %v769
  %v1154 = vadd.f32 %v386, %v770
  %v1155 = vadd.f32 %v387, %v771
  %v1156 = vadd.f32 %v388, %v772
  %v1157 = vadd.f32 %v389, %v773
  %v1158 = vadd.f32 %v390, %v774
  %v1159 = vadd.f32 %v391, %v775
  %v1160 = vadd.f32 %v392, %v776
  %v1161 = vadd.f32 %v393, %v777
  %v1162 = vadd.f32 %v394, %v778
  %vm1163 = vcmask 55296
  %1164 = vst.msk [vmem:[%s2] sm:$0x7f] %vm1163, %v779
  %1165 = vst.msk [vmem:[%s2 + $0x8] sm:$0x7f] %vm1163, %v780
  %1166 = vst.msk [vmem:[%s2 + $0x10] sm:$0x7f] %vm1163, %v781
  %1167 = vst.msk [vmem:[%s2 + $0x18] sm:$0x7f] %vm1163, %v782
  %1168 = vst.msk [vmem:[%s2 + $0x20] sm:$0x7f] %vm1163, %v783
  %1169 = vst.msk [vmem:[%s2 + $0x28] sm:$0x7f] %vm1163, %v784
  %1170 = vst.msk [vmem:[%s2 + $0x30] sm:$0x7f] %vm1163, %v785
  %1171 = vst.msk [vmem:[%s2 + $0x38] sm:$0x7f] %vm1163, %v786
  %1172 = vst.msk [vmem:[%s2 + $0x40] sm:$0x7f] %vm1163, %v787
  %1173 = vst.msk [vmem:[%s2 + $0x48] sm:$0x7f] %vm1163, %v788
  %1174 = vst.msk [vmem:[%s2 + $0x50] sm:$0x7f] %vm1163, %v789
  %1175 = vst.msk [vmem:[%s2 + $0x58] sm:$0x7f] %vm1163, %v790
  %1176 = vst.msk [vmem:[%s2 + $0x60] sm:$0x7f] %vm1163, %v791
  %1177 = vst.msk [vmem:[%s2 + $0x68] sm:$0x7f] %vm1163, %v792
  %1178 = vst.msk [vmem:[%s2 + $0x70] sm:$0x7f] %vm1163, %v793
  %1179 = vst.msk [vmem:[%s2 + $0x78] sm:$0x7f] %vm1163, %v794
  %1180 = vst.msk [vmem:[%s2 + $0x80] sm:$0x7f] %vm1163, %v795
  %1181 = vst.msk [vmem:[%s2 + $0x88] sm:$0x7f] %vm1163, %v796
  %1182 = vst.msk [vmem:[%s2 + $0x90] sm:$0x7f] %vm1163, %v797
  %1183 = vst.msk [vmem:[%s2 + $0x98] sm:$0x7f] %vm1163, %v798
  %1184 = vst.msk [vmem:[%s2 + $0xa0] sm:$0x7f] %vm1163, %v799
  %1185 = vst.msk [vmem:[%s2 + $0xa8] sm:$0x7f] %vm1163, %v800
  %1186 = vst.msk [vmem:[%s2 + $0xb0] sm:$0x7f] %vm1163, %v801
  %1187 = vst.msk [vmem:[%s2 + $0xb8] sm:$0x7f] %vm1163, %v802
  %1188 = vst.msk [vmem:[%s2 + $0xc0] sm:$0x7f] %vm1163, %v803
  %1189 = vst.msk [vmem:[%s2 + $0xc8] sm:$0x7f] %vm1163, %v804
  %1190 = vst.msk [vmem:[%s2 + $0xd0] sm:$0x7f] %vm1163, %v805
  %1191 = vst.msk [vmem:[%s2 + $0xd8] sm:$0x7f] %vm1163, %v806
  %1192 = vst.msk [vmem:[%s2 + $0xe0] sm:$0x7f] %vm1163, %v807
  %1193 = vst.msk [vmem:[%s2 + $0xe8] sm:$0x7f] %vm1163, %v808
  %1194 = vst.msk [vmem:[%s2 + $0xf0] sm:$0x7f] %vm1163, %v809
  %1195 = vst.msk [vmem:[%s2 + $0xf8] sm:$0x7f] %vm1163, %v810
  %1196 = vst.msk [vmem:[%s2 + $0x100] sm:$0x7f] %vm1163, %v811
  %1197 = vst.msk [vmem:[%s2 + $0x108] sm:$0x7f] %vm1163, %v812
  %1198 = vst.msk [vmem:[%s2 + $0x110] sm:$0x7f] %vm1163, %v813
  %1199 = vst.msk [vmem:[%s2 + $0x118] sm:$0x7f] %vm1163, %v814
  %1200 = vst.msk [vmem:[%s2 + $0x120] sm:$0x7f] %vm1163, %v815
  %1201 = vst.msk [vmem:[%s2 + $0x128] sm:$0x7f] %vm1163, %v816
  %1202 = vst.msk [vmem:[%s2 + $0x130] sm:$0x7f] %vm1163, %v817
  %1203 = vst.msk [vmem:[%s2 + $0x138] sm:$0x7f] %vm1163, %v818
  %1204 = vst.msk [vmem:[%s2 + $0x140] sm:$0x7f] %vm1163, %v819
  %1205 = vst.msk [vmem:[%s2 + $0x148] sm:$0x7f] %vm1163, %v820
  %1206 = vst.msk [vmem:[%s2 + $0x150] sm:$0x7f] %vm1163, %v821
  %1207 = vst.msk [vmem:[%s2 + $0x158] sm:$0x7f] %vm1163, %v822
  %1208 = vst.msk [vmem:[%s2 + $0x160] sm:$0x7f] %vm1163, %v823
  %1209 = vst.msk [vmem:[%s2 + $0x168] sm:$0x7f] %vm1163, %v824
  %1210 = vst.msk [vmem:[%s2 + $0x170] sm:$0x7f] %vm1163, %v825
  %1211 = vst.msk [vmem:[%s2 + $0x178] sm:$0x7f] %vm1163, %v826
  %1212 = vst.msk [vmem:[%s2 + $0x180] sm:$0x7f] %vm1163, %v827
  %1213 = vst.msk [vmem:[%s2 + $0x188] sm:$0x7f] %vm1163, %v828
  %1214 = vst.msk [vmem:[%s2 + $0x190] sm:$0x7f] %vm1163, %v829
  %1215 = vst.msk [vmem:[%s2 + $0x198] sm:$0x7f] %vm1163, %v830
  %1216 = vst.msk [vmem:[%s2 + $0x1a0] sm:$0x7f] %vm1163, %v831
  %1217 = vst.msk [vmem:[%s2 + $0x1a8] sm:$0x7f] %vm1163, %v832
  %1218 = vst.msk [vmem:[%s2 + $0x1b0] sm:$0x7f] %vm1163, %v833
  %1219 = vst.msk [vmem:[%s2 + $0x1b8] sm:$0x7f] %vm1163, %v834
  %1220 = vst.msk [vmem:[%s2 + $0x1c0] sm:$0x7f] %vm1163, %v835
  %1221 = vst.msk [vmem:[%s2 + $0x1c8] sm:$0x7f] %vm1163, %v836
  %1222 = vst.msk [vmem:[%s2 + $0x1d0] sm:$0x7f] %vm1163, %v837
  %1223 = vst.msk [vmem:[%s2 + $0x1d8] sm:$0x7f] %vm1163, %v838
  %1224 = vst.msk [vmem:[%s2 + $0x1e0] sm:$0x7f] %vm1163, %v839
  %1225 = vst.msk [vmem:[%s2 + $0x1e8] sm:$0x7f] %vm1163, %v840
  %1226 = vst.msk [vmem:[%s2 + $0x1f0] sm:$0x7f] %vm1163, %v841
  %1227 = vst.msk [vmem:[%s2 + $0x1f8] sm:$0x7f] %vm1163, %v842
  %1228 = vst.msk [vmem:[%s2 + $0x200] sm:$0x7f] %vm1163, %v843
  %1229 = vst.msk [vmem:[%s2 + $0x208] sm:$0x7f] %vm1163, %v844
  %1230 = vst.msk [vmem:[%s2 + $0x210] sm:$0x7f] %vm1163, %v845
  %1231 = vst.msk [vmem:[%s2 + $0x218] sm:$0x7f] %vm1163, %v846
  %1232 = vst.msk [vmem:[%s2 + $0x220] sm:$0x7f] %vm1163, %v847
  %1233 = vst.msk [vmem:[%s2 + $0x228] sm:$0x7f] %vm1163, %v848
  %1234 = vst.msk [vmem:[%s2 + $0x230] sm:$0x7f] %vm1163, %v849
  %1235 = vst.msk [vmem:[%s2 + $0x238] sm:$0x7f] %vm1163, %v850
  %1236 = vst.msk [vmem:[%s2 + $0x240] sm:$0x7f] %vm1163, %v851
  %1237 = vst.msk [vmem:[%s2 + $0x248] sm:$0x7f] %vm1163, %v852
  %1238 = vst.msk [vmem:[%s2 + $0x250] sm:$0x7f] %vm1163, %v853
  %1239 = vst.msk [vmem:[%s2 + $0x258] sm:$0x7f] %vm1163, %v854
  %1240 = vst.msk [vmem:[%s2 + $0x260] sm:$0x7f] %vm1163, %v855
  %1241 = vst.msk [vmem:[%s2 + $0x268] sm:$0x7f] %vm1163, %v856
  %1242 = vst.msk [vmem:[%s2 + $0x270] sm:$0x7f] %vm1163, %v857
  %1243 = vst.msk [vmem:[%s2 + $0x278] sm:$0x7f] %vm1163, %v858
  %1244 = vst.msk [vmem:[%s2 + $0x280] sm:$0x7f] %vm1163, %v859
  %1245 = vst.msk [vmem:[%s2 + $0x288] sm:$0x7f] %vm1163, %v860
  %1246 = vst.msk [vmem:[%s2 + $0x290] sm:$0x7f] %vm1163, %v861
  %1247 = vst.msk [vmem:[%s2 + $0x298] sm:$0x7f] %vm1163, %v862
  %1248 = vst.msk [vmem:[%s2 + $0x2a0] sm:$0x7f] %vm1163, %v863
  %1249 = vst.msk [vmem:[%s2 + $0x2a8] sm:$0x7f] %vm1163, %v864
  %1250 = vst.msk [vmem:[%s2 + $0x2b0] sm:$0x7f] %vm1163, %v865
  %1251 = vst.msk [vmem:[%s2 + $0x2b8] sm:$0x7f] %vm1163, %v866
  %1252 = vst.msk [vmem:[%s2 + $0x2c0] sm:$0x7f] %vm1163, %v867
  %1253 = vst.msk [vmem:[%s2 + $0x2c8] sm:$0x7f] %vm1163, %v868
  %1254 = vst.msk [vmem:[%s2 + $0x2d0] sm:$0x7f] %vm1163, %v869
  %1255 = vst.msk [vmem:[%s2 + $0x2d8] sm:$0x7f] %vm1163, %v870
  %1256 = vst.msk [vmem:[%s2 + $0x2e0] sm:$0x7f] %vm1163, %v871
  %1257 = vst.msk [vmem:[%s2 + $0x2e8] sm:$0x7f] %vm1163, %v872
  %1258 = vst.msk [vmem:[%s2 + $0x2f0] sm:$0x7f] %vm1163, %v873
  %1259 = vst.msk [vmem:[%s2 + $0x2f8] sm:$0x7f] %vm1163, %v874
  %1260 = vst.msk [vmem:[%s2 + $0x300] sm:$0x7f] %vm1163, %v875
  %1261 = vst.msk [vmem:[%s2 + $0x308] sm:$0x7f] %vm1163, %v876
  %1262 = vst.msk [vmem:[%s2 + $0x310] sm:$0x7f] %vm1163, %v877
  %1263 = vst.msk [vmem:[%s2 + $0x318] sm:$0x7f] %vm1163, %v878
  %1264 = vst.msk [vmem:[%s2 + $0x320] sm:$0x7f] %vm1163, %v879
  %1265 = vst.msk [vmem:[%s2 + $0x328] sm:$0x7f] %vm1163, %v880
  %1266 = vst.msk [vmem:[%s2 + $0x330] sm:$0x7f] %vm1163, %v881
  %1267 = vst.msk [vmem:[%s2 + $0x338] sm:$0x7f] %vm1163, %v882
  %1268 = vst.msk [vmem:[%s2 + $0x340] sm:$0x7f] %vm1163, %v883
  %1269 = vst.msk [vmem:[%s2 + $0x348] sm:$0x7f] %vm1163, %v884
  %1270 = vst.msk [vmem:[%s2 + $0x350] sm:$0x7f] %vm1163, %v885
  %1271 = vst.msk [vmem:[%s2 + $0x358] sm:$0x7f] %vm1163, %v886
  %1272 = vst.msk [vmem:[%s2 + $0x360] sm:$0x7f] %vm1163, %v887
  %1273 = vst.msk [vmem:[%s2 + $0x368] sm:$0x7f] %vm1163, %v888
  %1274 = vst.msk [vmem:[%s2 + $0x370] sm:$0x7f] %vm1163, %v889
  %1275 = vst.msk [vmem:[%s2 + $0x378] sm:$0x7f] %vm1163, %v890
  %1276 = vst.msk [vmem:[%s2 + $0x380] sm:$0x7f] %vm1163, %v891
  %1277 = vst.msk [vmem:[%s2 + $0x388] sm:$0x7f] %vm1163, %v892
  %1278 = vst.msk [vmem:[%s2 + $0x390] sm:$0x7f] %vm1163, %v893
  %1279 = vst.msk [vmem:[%s2 + $0x398] sm:$0x7f] %vm1163, %v894
  %1280 = vst.msk [vmem:[%s2 + $0x3a0] sm:$0x7f] %vm1163, %v895
  %1281 = vst.msk [vmem:[%s2 + $0x3a8] sm:$0x7f] %vm1163, %v896
  %1282 = vst.msk [vmem:[%s2 + $0x3b0] sm:$0x7f] %vm1163, %v897
  %1283 = vst.msk [vmem:[%s2 + $0x3b8] sm:$0x7f] %vm1163, %v898
  %1284 = vst.msk [vmem:[%s2 + $0x3c0] sm:$0x7f] %vm1163, %v899
  %1285 = vst.msk [vmem:[%s2 + $0x3c8] sm:$0x7f] %vm1163, %v900
  %1286 = vst.msk [vmem:[%s2 + $0x3d0] sm:$0x7f] %vm1163, %v901
  %1287 = vst.msk [vmem:[%s2 + $0x3d8] sm:$0x7f] %vm1163, %v902
  %1288 = vst.msk [vmem:[%s2 + $0x3e0] sm:$0x7f] %vm1163, %v903
  %1289 = vst.msk [vmem:[%s2 + $0x3e8] sm:$0x7f] %vm1163, %v904
  %1290 = vst.msk [vmem:[%s2 + $0x3f0] sm:$0x7f] %vm1163, %v905
  %1291 = vst.msk [vmem:[%s2 + $0x3f8] sm:$0x7f] %vm1163, %v906
  %1292 = vst.msk [vmem:[%s2 + $0x400] sm:$0x7f] %vm1163, %v907
  %1293 = vst.msk [vmem:[%s2 + $0x408] sm:$0x7f] %vm1163, %v908
  %1294 = vst.msk [vmem:[%s2 + $0x410] sm:$0x7f] %vm1163, %v909
  %1295 = vst.msk [vmem:[%s2 + $0x418] sm:$0x7f] %vm1163, %v910
  %1296 = vst.msk [vmem:[%s2 + $0x420] sm:$0x7f] %vm1163, %v911
  %1297 = vst.msk [vmem:[%s2 + $0x428] sm:$0x7f] %vm1163, %v912
  %1298 = vst.msk [vmem:[%s2 + $0x430] sm:$0x7f] %vm1163, %v913
  %1299 = vst.msk [vmem:[%s2 + $0x438] sm:$0x7f] %vm1163, %v914
  %1300 = vst.msk [vmem:[%s2 + $0x440] sm:$0x7f] %vm1163, %v915
  %1301 = vst.msk [vmem:[%s2 + $0x448] sm:$0x7f] %vm1163, %v916
  %1302 = vst.msk [vmem:[%s2 + $0x450] sm:$0x7f] %vm1163, %v917
  %1303 = vst.msk [vmem:[%s2 + $0x458] sm:$0x7f] %vm1163, %v918
  %1304 = vst.msk [vmem:[%s2 + $0x460] sm:$0x7f] %vm1163, %v919
  %1305 = vst.msk [vmem:[%s2 + $0x468] sm:$0x7f] %vm1163, %v920
  %1306 = vst.msk [vmem:[%s2 + $0x470] sm:$0x7f] %vm1163, %v921
  %1307 = vst.msk [vmem:[%s2 + $0x478] sm:$0x7f] %vm1163, %v922
  %1308 = vst.msk [vmem:[%s2 + $0x480] sm:$0x7f] %vm1163, %v923
  %1309 = vst.msk [vmem:[%s2 + $0x488] sm:$0x7f] %vm1163, %v924
  %1310 = vst.msk [vmem:[%s2 + $0x490] sm:$0x7f] %vm1163, %v925
  %1311 = vst.msk [vmem:[%s2 + $0x498] sm:$0x7f] %vm1163, %v926
  %1312 = vst.msk [vmem:[%s2 + $0x4a0] sm:$0x7f] %vm1163, %v927
  %1313 = vst.msk [vmem:[%s2 + $0x4a8] sm:$0x7f] %vm1163, %v928
  %1314 = vst.msk [vmem:[%s2 + $0x4b0] sm:$0x7f] %vm1163, %v929
  %1315 = vst.msk [vmem:[%s2 + $0x4b8] sm:$0x7f] %vm1163, %v930
  %1316 = vst.msk [vmem:[%s2 + $0x4c0] sm:$0x7f] %vm1163, %v931
  %1317 = vst.msk [vmem:[%s2 + $0x4c8] sm:$0x7f] %vm1163, %v932
  %1318 = vst.msk [vmem:[%s2 + $0x4d0] sm:$0x7f] %vm1163, %v933
  %1319 = vst.msk [vmem:[%s2 + $0x4d8] sm:$0x7f] %vm1163, %v934
  %1320 = vst.msk [vmem:[%s2 + $0x4e0] sm:$0x7f] %vm1163, %v935
  %1321 = vst.msk [vmem:[%s2 + $0x4e8] sm:$0x7f] %vm1163, %v936
  %1322 = vst.msk [vmem:[%s2 + $0x4f0] sm:$0x7f] %vm1163, %v937
  %1323 = vst.msk [vmem:[%s2 + $0x4f8] sm:$0x7f] %vm1163, %v938
  %1324 = vst.msk [vmem:[%s2 + $0x500] sm:$0x7f] %vm1163, %v939
  %1325 = vst.msk [vmem:[%s2 + $0x508] sm:$0x7f] %vm1163, %v940
  %1326 = vst.msk [vmem:[%s2 + $0x510] sm:$0x7f] %vm1163, %v941
  %1327 = vst.msk [vmem:[%s2 + $0x518] sm:$0x7f] %vm1163, %v942
  %1328 = vst.msk [vmem:[%s2 + $0x520] sm:$0x7f] %vm1163, %v943
  %1329 = vst.msk [vmem:[%s2 + $0x528] sm:$0x7f] %vm1163, %v944
  %1330 = vst.msk [vmem:[%s2 + $0x530] sm:$0x7f] %vm1163, %v945
  %1331 = vst.msk [vmem:[%s2 + $0x538] sm:$0x7f] %vm1163, %v946
  %1332 = vst.msk [vmem:[%s2 + $0x540] sm:$0x7f] %vm1163, %v947
  %1333 = vst.msk [vmem:[%s2 + $0x548] sm:$0x7f] %vm1163, %v948
  %1334 = vst.msk [vmem:[%s2 + $0x550] sm:$0x7f] %vm1163, %v949
  %1335 = vst.msk [vmem:[%s2 + $0x558] sm:$0x7f] %vm1163, %v950
  %1336 = vst.msk [vmem:[%s2 + $0x560] sm:$0x7f] %vm1163, %v951
  %1337 = vst.msk [vmem:[%s2 + $0x568] sm:$0x7f] %vm1163, %v952
  %1338 = vst.msk [vmem:[%s2 + $0x570] sm:$0x7f] %vm1163, %v953
  %1339 = vst.msk [vmem:[%s2 + $0x578] sm:$0x7f] %vm1163, %v954
  %1340 = vst.msk [vmem:[%s2 + $0x580] sm:$0x7f] %vm1163, %v955
  %1341 = vst.msk [vmem:[%s2 + $0x588] sm:$0x7f] %vm1163, %v956
  %1342 = vst.msk [vmem:[%s2 + $0x590] sm:$0x7f] %vm1163, %v957
  %1343 = vst.msk [vmem:[%s2 + $0x598] sm:$0x7f] %vm1163, %v958
  %1344 = vst.msk [vmem:[%s2 + $0x5a0] sm:$0x7f] %vm1163, %v959
  %1345 = vst.msk [vmem:[%s2 + $0x5a8] sm:$0x7f] %vm1163, %v960
  %1346 = vst.msk [vmem:[%s2 + $0x5b0] sm:$0x7f] %vm1163, %v961
  %1347 = vst.msk [vmem:[%s2 + $0x5b8] sm:$0x7f] %vm1163, %v962
  %1348 = vst.msk [vmem:[%s2 + $0x5c0] sm:$0x7f] %vm1163, %v963
  %1349 = vst.msk [vmem:[%s2 + $0x5c8] sm:$0x7f] %vm1163, %v964
  %1350 = vst.msk [vmem:[%s2 + $0x5d0] sm:$0x7f] %vm1163, %v965
  %1351 = vst.msk [vmem:[%s2 + $0x5d8] sm:$0x7f] %vm1163, %v966
  %1352 = vst.msk [vmem:[%s2 + $0x5e0] sm:$0x7f] %vm1163, %v967
  %1353 = vst.msk [vmem:[%s2 + $0x5e8] sm:$0x7f] %vm1163, %v968
  %1354 = vst.msk [vmem:[%s2 + $0x5f0] sm:$0x7f] %vm1163, %v969
  %1355 = vst.msk [vmem:[%s2 + $0x5f8] sm:$0x7f] %vm1163, %v970
  %1356 = vst.msk [vmem:[%s2 + $0x600] sm:$0x7f] %vm1163, %v971
  %1357 = vst.msk [vmem:[%s2 + $0x608] sm:$0x7f] %vm1163, %v972
  %1358 = vst.msk [vmem:[%s2 + $0x610] sm:$0x7f] %vm1163, %v973
  %1359 = vst.msk [vmem:[%s2 + $0x618] sm:$0x7f] %vm1163, %v974
  %1360 = vst.msk [vmem:[%s2 + $0x620] sm:$0x7f] %vm1163, %v975
  %1361 = vst.msk [vmem:[%s2 + $0x628] sm:$0x7f] %vm1163, %v976
  %1362 = vst.msk [vmem:[%s2 + $0x630] sm:$0x7f] %vm1163, %v977
  %1363 = vst.msk [vmem:[%s2 + $0x638] sm:$0x7f] %vm1163, %v978
  %1364 = vst.msk [vmem:[%s2 + $0x640] sm:$0x7f] %vm1163, %v979
  %1365 = vst.msk [vmem:[%s2 + $0x648] sm:$0x7f] %vm1163, %v980
  %1366 = vst.msk [vmem:[%s2 + $0x650] sm:$0x7f] %vm1163, %v981
  %1367 = vst.msk [vmem:[%s2 + $0x658] sm:$0x7f] %vm1163, %v982
  %1368 = vst.msk [vmem:[%s2 + $0x660] sm:$0x7f] %vm1163, %v983
  %1369 = vst.msk [vmem:[%s2 + $0x668] sm:$0x7f] %vm1163, %v984
  %1370 = vst.msk [vmem:[%s2 + $0x670] sm:$0x7f] %vm1163, %v985
  %1371 = vst.msk [vmem:[%s2 + $0x678] sm:$0x7f] %vm1163, %v986
  %1372 = vst.msk [vmem:[%s2 + $0x680] sm:$0x7f] %vm1163, %v987
  %1373 = vst.msk [vmem:[%s2 + $0x688] sm:$0x7f] %vm1163, %v988
  %1374 = vst.msk [vmem:[%s2 + $0x690] sm:$0x7f] %vm1163, %v989
  %1375 = vst.msk [vmem:[%s2 + $0x698] sm:$0x7f] %vm1163, %v990
  %1376 = vst.msk [vmem:[%s2 + $0x6a0] sm:$0x7f] %vm1163, %v991
  %1377 = vst.msk [vmem:[%s2 + $0x6a8] sm:$0x7f] %vm1163, %v992
  %1378 = vst.msk [vmem:[%s2 + $0x6b0] sm:$0x7f] %vm1163, %v993
  %1379 = vst.msk [vmem:[%s2 + $0x6b8] sm:$0x7f] %vm1163, %v994
  %1380 = vst.msk [vmem:[%s2 + $0x6c0] sm:$0x7f] %vm1163, %v995
  %1381 = vst.msk [vmem:[%s2 + $0x6c8] sm:$0x7f] %vm1163, %v996
  %1382 = vst.msk [vmem:[%s2 + $0x6d0] sm:$0x7f] %vm1163, %v997
  %1383 = vst.msk [vmem:[%s2 + $0x6d8] sm:$0x7f] %vm1163, %v998
  %1384 = vst.msk [vmem:[%s2 + $0x6e0] sm:$0x7f] %vm1163, %v999
  %1385 = vst.msk [vmem:[%s2 + $0x6e8] sm:$0x7f] %vm1163, %v1000
  %1386 = vst.msk [vmem:[%s2 + $0x6f0] sm:$0x7f] %vm1163, %v1001
  %1387 = vst.msk [vmem:[%s2 + $0x6f8] sm:$0x7f] %vm1163, %v1002
  %1388 = vst.msk [vmem:[%s2 + $0x700] sm:$0x7f] %vm1163, %v1003
  %1389 = vst.msk [vmem:[%s2 + $0x708] sm:$0x7f] %vm1163, %v1004
  %1390 = vst.msk [vmem:[%s2 + $0x710] sm:$0x7f] %vm1163, %v1005
  %1391 = vst.msk [vmem:[%s2 + $0x718] sm:$0x7f] %vm1163, %v1006
  %1392 = vst.msk [vmem:[%s2 + $0x720] sm:$0x7f] %vm1163, %v1007
  %1393 = vst.msk [vmem:[%s2 + $0x728] sm:$0x7f] %vm1163, %v1008
  %1394 = vst.msk [vmem:[%s2 + $0x730] sm:$0x7f] %vm1163, %v1009
  %1395 = vst.msk [vmem:[%s2 + $0x738] sm:$0x7f] %vm1163, %v1010
  %1396 = vst.msk [vmem:[%s2 + $0x740] sm:$0x7f] %vm1163, %v1011
  %1397 = vst.msk [vmem:[%s2 + $0x748] sm:$0x7f] %vm1163, %v1012
  %1398 = vst.msk [vmem:[%s2 + $0x750] sm:$0x7f] %vm1163, %v1013
  %1399 = vst.msk [vmem:[%s2 + $0x758] sm:$0x7f] %vm1163, %v1014
  %1400 = vst.msk [vmem:[%s2 + $0x760] sm:$0x7f] %vm1163, %v1015
  %1401 = vst.msk [vmem:[%s2 + $0x768] sm:$0x7f] %vm1163, %v1016
  %1402 = vst.msk [vmem:[%s2 + $0x770] sm:$0x7f] %vm1163, %v1017
  %1403 = vst.msk [vmem:[%s2 + $0x778] sm:$0x7f] %vm1163, %v1018
  %1404 = vst.msk [vmem:[%s2 + $0x780] sm:$0x7f] %vm1163, %v1019
  %1405 = vst.msk [vmem:[%s2 + $0x788] sm:$0x7f] %vm1163, %v1020
  %1406 = vst.msk [vmem:[%s2 + $0x790] sm:$0x7f] %vm1163, %v1021
  %1407 = vst.msk [vmem:[%s2 + $0x798] sm:$0x7f] %vm1163, %v1022
  %1408 = vst.msk [vmem:[%s2 + $0x7a0] sm:$0x7f] %vm1163, %v1023
  %1409 = vst.msk [vmem:[%s2 + $0x7a8] sm:$0x7f] %vm1163, %v1024
  %1410 = vst.msk [vmem:[%s2 + $0x7b0] sm:$0x7f] %vm1163, %v1025
  %1411 = vst.msk [vmem:[%s2 + $0x7b8] sm:$0x7f] %vm1163, %v1026
  %1412 = vst.msk [vmem:[%s2 + $0x7c0] sm:$0x7f] %vm1163, %v1027
  %1413 = vst.msk [vmem:[%s2 + $0x7c8] sm:$0x7f] %vm1163, %v1028
  %1414 = vst.msk [vmem:[%s2 + $0x7d0] sm:$0x7f] %vm1163, %v1029
  %1415 = vst.msk [vmem:[%s2 + $0x7d8] sm:$0x7f] %vm1163, %v1030
  %1416 = vst.msk [vmem:[%s2 + $0x7e0] sm:$0x7f] %vm1163, %v1031
  %1417 = vst.msk [vmem:[%s2 + $0x7e8] sm:$0x7f] %vm1163, %v1032
  %1418 = vst.msk [vmem:[%s2 + $0x7f0] sm:$0x7f] %vm1163, %v1033
  %1419 = vst.msk [vmem:[%s2 + $0x7f8] sm:$0x7f] %vm1163, %v1034
  %1420 = vst.msk [vmem:[%s2 + $0x800] sm:$0x7f] %vm1163, %v1035
  %1421 = vst.msk [vmem:[%s2 + $0x808] sm:$0x7f] %vm1163, %v1036
  %1422 = vst.msk [vmem:[%s2 + $0x810] sm:$0x7f] %vm1163, %v1037
  %1423 = vst.msk [vmem:[%s2 + $0x818] sm:$0x7f] %vm1163, %v1038
  %1424 = vst.msk [vmem:[%s2 + $0x820] sm:$0x7f] %vm1163, %v1039
  %1425 = vst.msk [vmem:[%s2 + $0x828] sm:$0x7f] %vm1163, %v1040
  %1426 = vst.msk [vmem:[%s2 + $0x830] sm:$0x7f] %vm1163, %v1041
  %1427 = vst.msk [vmem:[%s2 + $0x838] sm:$0x7f] %vm1163, %v1042
  %1428 = vst.msk [vmem:[%s2 + $0x840] sm:$0x7f] %vm1163, %v1043
  %1429 = vst.msk [vmem:[%s2 + $0x848] sm:$0x7f] %vm1163, %v1044
  %1430 = vst.msk [vmem:[%s2 + $0x850] sm:$0x7f] %vm1163, %v1045
  %1431 = vst.msk [vmem:[%s2 + $0x858] sm:$0x7f] %vm1163, %v1046
  %1432 = vst.msk [vmem:[%s2 + $0x860] sm:$0x7f] %vm1163, %v1047
  %1433 = vst.msk [vmem:[%s2 + $0x868] sm:$0x7f] %vm1163, %v1048
  %1434 = vst.msk [vmem:[%s2 + $0x870] sm:$0x7f] %vm1163, %v1049
  %1435 = vst.msk [vmem:[%s2 + $0x878] sm:$0x7f] %vm1163, %v1050
  %1436 = vst.msk [vmem:[%s2 + $0x880] sm:$0x7f] %vm1163, %v1051
  %1437 = vst.msk [vmem:[%s2 + $0x888] sm:$0x7f] %vm1163, %v1052
  %1438 = vst.msk [vmem:[%s2 + $0x890] sm:$0x7f] %vm1163, %v1053
  %1439 = vst.msk [vmem:[%s2 + $0x898] sm:$0x7f] %vm1163, %v1054
  %1440 = vst.msk [vmem:[%s2 + $0x8a0] sm:$0x7f] %vm1163, %v1055
  %1441 = vst.msk [vmem:[%s2 + $0x8a8] sm:$0x7f] %vm1163, %v1056
  %1442 = vst.msk [vmem:[%s2 + $0x8b0] sm:$0x7f] %vm1163, %v1057
  %1443 = vst.msk [vmem:[%s2 + $0x8b8] sm:$0x7f] %vm1163, %v1058
  %1444 = vst.msk [vmem:[%s2 + $0x8c0] sm:$0x7f] %vm1163, %v1059
  %1445 = vst.msk [vmem:[%s2 + $0x8c8] sm:$0x7f] %vm1163, %v1060
  %1446 = vst.msk [vmem:[%s2 + $0x8d0] sm:$0x7f] %vm1163, %v1061
  %1447 = vst.msk [vmem:[%s2 + $0x8d8] sm:$0x7f] %vm1163, %v1062
  %1448 = vst.msk [vmem:[%s2 + $0x8e0] sm:$0x7f] %vm1163, %v1063
  %1449 = vst.msk [vmem:[%s2 + $0x8e8] sm:$0x7f] %vm1163, %v1064
  %1450 = vst.msk [vmem:[%s2 + $0x8f0] sm:$0x7f] %vm1163, %v1065
  %1451 = vst.msk [vmem:[%s2 + $0x8f8] sm:$0x7f] %vm1163, %v1066
  %1452 = vst.msk [vmem:[%s2 + $0x900] sm:$0x7f] %vm1163, %v1067
  %1453 = vst.msk [vmem:[%s2 + $0x908] sm:$0x7f] %vm1163, %v1068
  %1454 = vst.msk [vmem:[%s2 + $0x910] sm:$0x7f] %vm1163, %v1069
  %1455 = vst.msk [vmem:[%s2 + $0x918] sm:$0x7f] %vm1163, %v1070
  %1456 = vst.msk [vmem:[%s2 + $0x920] sm:$0x7f] %vm1163, %v1071
  %1457 = vst.msk [vmem:[%s2 + $0x928] sm:$0x7f] %vm1163, %v1072
  %1458 = vst.msk [vmem:[%s2 + $0x930] sm:$0x7f] %vm1163, %v1073
  %1459 = vst.msk [vmem:[%s2 + $0x938] sm:$0x7f] %vm1163, %v1074
  %1460 = vst.msk [vmem:[%s2 + $0x940] sm:$0x7f] %vm1163, %v1075
  %1461 = vst.msk [vmem:[%s2 + $0x948] sm:$0x7f] %vm1163, %v1076
  %1462 = vst.msk [vmem:[%s2 + $0x950] sm:$0x7f] %vm1163, %v1077
  %1463 = vst.msk [vmem:[%s2 + $0x958] sm:$0x7f] %vm1163, %v1078
  %1464 = vst.msk [vmem:[%s2 + $0x960] sm:$0x7f] %vm1163, %v1079
  %1465 = vst.msk [vmem:[%s2 + $0x968] sm:$0x7f] %vm1163, %v1080
  %1466 = vst.msk [vmem:[%s2 + $0x970] sm:$0x7f] %vm1163, %v1081
  %1467 = vst.msk [vmem:[%s2 + $0x978] sm:$0x7f] %vm1163, %v1082
  %1468 = vst.msk [vmem:[%s2 + $0x980] sm:$0x7f] %vm1163, %v1083
  %1469 = vst.msk [vmem:[%s2 + $0x988] sm:$0x7f] %vm1163, %v1084
  %1470 = vst.msk [vmem:[%s2 + $0x990] sm:$0x7f] %vm1163, %v1085
  %1471 = vst.msk [vmem:[%s2 + $0x998] sm:$0x7f] %vm1163, %v1086
  %1472 = vst.msk [vmem:[%s2 + $0x9a0] sm:$0x7f] %vm1163, %v1087
  %1473 = vst.msk [vmem:[%s2 + $0x9a8] sm:$0x7f] %vm1163, %v1088
  %1474 = vst.msk [vmem:[%s2 + $0x9b0] sm:$0x7f] %vm1163, %v1089
  %1475 = vst.msk [vmem:[%s2 + $0x9b8] sm:$0x7f] %vm1163, %v1090
  %1476 = vst.msk [vmem:[%s2 + $0x9c0] sm:$0x7f] %vm1163, %v1091
  %1477 = vst.msk [vmem:[%s2 + $0x9c8] sm:$0x7f] %vm1163, %v1092
  %1478 = vst.msk [vmem:[%s2 + $0x9d0] sm:$0x7f] %vm1163, %v1093
  %1479 = vst.msk [vmem:[%s2 + $0x9d8] sm:$0x7f] %vm1163, %v1094
  %1480 = vst.msk [vmem:[%s2 + $0x9e0] sm:$0x7f] %vm1163, %v1095
  %1481 = vst.msk [vmem:[%s2 + $0x9e8] sm:$0x7f] %vm1163, %v1096
  %1482 = vst.msk [vmem:[%s2 + $0x9f0] sm:$0x7f] %vm1163, %v1097
  %1483 = vst.msk [vmem:[%s2 + $0x9f8] sm:$0x7f] %vm1163, %v1098
  %1484 = vst.msk [vmem:[%s2 + $0xa00] sm:$0x7f] %vm1163, %v1099
  %1485 = vst.msk [vmem:[%s2 + $0xa08] sm:$0x7f] %vm1163, %v1100
  %1486 = vst.msk [vmem:[%s2 + $0xa10] sm:$0x7f] %vm1163, %v1101
  %1487 = vst.msk [vmem:[%s2 + $0xa18] sm:$0x7f] %vm1163, %v1102
  %1488 = vst.msk [vmem:[%s2 + $0xa20] sm:$0x7f] %vm1163, %v1103
  %1489 = vst.msk [vmem:[%s2 + $0xa28] sm:$0x7f] %vm1163, %v1104
  %1490 = vst.msk [vmem:[%s2 + $0xa30] sm:$0x7f] %vm1163, %v1105
  %1491 = vst.msk [vmem:[%s2 + $0xa38] sm:$0x7f] %vm1163, %v1106
  %1492 = vst.msk [vmem:[%s2 + $0xa40] sm:$0x7f] %vm1163, %v1107
  %1493 = vst.msk [vmem:[%s2 + $0xa48] sm:$0x7f] %vm1163, %v1108
  %1494 = vst.msk [vmem:[%s2 + $0xa50] sm:$0x7f] %vm1163, %v1109
  %1495 = vst.msk [vmem:[%s2 + $0xa58] sm:$0x7f] %vm1163, %v1110
  %1496 = vst.msk [vmem:[%s2 + $0xa60] sm:$0x7f] %vm1163, %v1111
  %1497 = vst.msk [vmem:[%s2 + $0xa68] sm:$0x7f] %vm1163, %v1112
  %1498 = vst.msk [vmem:[%s2 + $0xa70] sm:$0x7f] %vm1163, %v1113
  %1499 = vst.msk [vmem:[%s2 + $0xa78] sm:$0x7f] %vm1163, %v1114
  %1500 = vst.msk [vmem:[%s2 + $0xa80] sm:$0x7f] %vm1163, %v1115
  %1501 = vst.msk [vmem:[%s2 + $0xa88] sm:$0x7f] %vm1163, %v1116
  %1502 = vst.msk [vmem:[%s2 + $0xa90] sm:$0x7f] %vm1163, %v1117
  %1503 = vst.msk [vmem:[%s2 + $0xa98] sm:$0x7f] %vm1163, %v1118
  %1504 = vst.msk [vmem:[%s2 + $0xaa0] sm:$0x7f] %vm1163, %v1119
  %1505 = vst.msk [vmem:[%s2 + $0xaa8] sm:$0x7f] %vm1163, %v1120
  %1506 = vst.msk [vmem:[%s2 + $0xab0] sm:$0x7f] %vm1163, %v1121
  %1507 = vst.msk [vmem:[%s2 + $0xab8] sm:$0x7f] %vm1163, %v1122
  %1508 = vst.msk [vmem:[%s2 + $0xac0] sm:$0x7f] %vm1163, %v1123
  %1509 = vst.msk [vmem:[%s2 + $0xac8] sm:$0x7f] %vm1163, %v1124
  %1510 = vst.msk [vmem:[%s2 + $0xad0] sm:$0x7f] %vm1163, %v1125
  %1511 = vst.msk [vmem:[%s2 + $0xad8] sm:$0x7f] %vm1163, %v1126
  %1512 = vst.msk [vmem:[%s2 + $0xae0] sm:$0x7f] %vm1163, %v1127
  %1513 = vst.msk [vmem:[%s2 + $0xae8] sm:$0x7f] %vm1163, %v1128
  %1514 = vst.msk [vmem:[%s2 + $0xaf0] sm:$0x7f] %vm1163, %v1129
  %1515 = vst.msk [vmem:[%s2 + $0xaf8] sm:$0x7f] %vm1163, %v1130
  %1516 = vst.msk [vmem:[%s2 + $0xb00] sm:$0x7f] %vm1163, %v1131
  %1517 = vst.msk [vmem:[%s2 + $0xb08] sm:$0x7f] %vm1163, %v1132
  %1518 = vst.msk [vmem:[%s2 + $0xb10] sm:$0x7f] %vm1163, %v1133
  %1519 = vst.msk [vmem:[%s2 + $0xb18] sm:$0x7f] %vm1163, %v1134
  %1520 = vst.msk [vmem:[%s2 + $0xb20] sm:$0x7f] %vm1163, %v1135
  %1521 = vst.msk [vmem:[%s2 + $0xb28] sm:$0x7f] %vm1163, %v1136
  %1522 = vst.msk [vmem:[%s2 + $0xb30] sm:$0x7f] %vm1163, %v1137
  %1523 = vst.msk [vmem:[%s2 + $0xb38] sm:$0x7f] %vm1163, %v1138
  %1524 = vst.msk [vmem:[%s2 + $0xb40] sm:$0x7f] %vm1163, %v1139
  %1525 = vst.msk [vmem:[%s2 + $0xb48] sm:$0x7f] %vm1163, %v1140
  %1526 = vst.msk [vmem:[%s2 + $0xb50] sm:$0x7f] %vm1163, %v1141
  %1527 = vst.msk [vmem:[%s2 + $0xb58] sm:$0x7f] %vm1163, %v1142
  %1528 = vst.msk [vmem:[%s2 + $0xb60] sm:$0x7f] %vm1163, %v1143
  %1529 = vst.msk [vmem:[%s2 + $0xb68] sm:$0x7f] %vm1163, %v1144
  %1530 = vst.msk [vmem:[%s2 + $0xb70] sm:$0x7f] %vm1163, %v1145
  %1531 = vst.msk [vmem:[%s2 + $0xb78] sm:$0x7f] %vm1163, %v1146
  %1532 = vst.msk [vmem:[%s2 + $0xb80] sm:$0x7f] %vm1163, %v1147
  %1533 = vst.msk [vmem:[%s2 + $0xb88] sm:$0x7f] %vm1163, %v1148
  %1534 = vst.msk [vmem:[%s2 + $0xb90] sm:$0x7f] %vm1163, %v1149
  %1535 = vst.msk [vmem:[%s2 + $0xb98] sm:$0x7f] %vm1163, %v1150
  %1536 = vst.msk [vmem:[%s2 + $0xba0] sm:$0x7f] %vm1163, %v1151
  %1537 = vst.msk [vmem:[%s2 + $0xba8] sm:$0x7f] %vm1163, %v1152
  %1538 = vst.msk [vmem:[%s2 + $0xbb0] sm:$0x7f] %vm1163, %v1153
  %1539 = vst.msk [vmem:[%s2 + $0xbb8] sm:$0x7f] %vm1163, %v1154
  %1540 = vst.msk [vmem:[%s2 + $0xbc0] sm:$0x7f] %vm1163, %v1155
  %1541 = vst.msk [vmem:[%s2 + $0xbc8] sm:$0x7f] %vm1163, %v1156
  %1542 = vst.msk [vmem:[%s2 + $0xbd0] sm:$0x7f] %vm1163, %v1157
  %1543 = vst.msk [vmem:[%s2 + $0xbd8] sm:$0x7f] %vm1163, %v1158
  %1544 = vst.msk [vmem:[%s2 + $0xbe0] sm:$0x7f] %vm1163, %v1159
  %1545 = vst.msk [vmem:[%s2 + $0xbe8] sm:$0x7f] %vm1163, %v1160
  %1546 = vst.msk [vmem:[%s2 + $0xbf0] sm:$0x7f] %vm1163, %v1161
  %1547 = vst.msk [vmem:[%s2 + $0xbf8] sm:$0x7f] %vm1163, %v1162
  // Predicated region
  $region10: #{tpu_custom_call.1} parent=0 // pred_check
    _
  $region11: #{tpu_custom_call.1} parent=0 // pred_check_branch
    %1549 = sbr.rel (0) target = $region13
  $region12: #{tpu_custom_call.1} parent=0 // pred_region
    _
  $region13: #{tpu_custom_call.1} parent=0 // pred_fallthru
    _
  // Predicated region
  $region14: #{tpu_custom_call.1} parent=0 // pred_check
    _
  $region15: #{tpu_custom_call.1} parent=0 // pred_check_branch
    %1551 = sbr.rel (0) target = $region17
  $region16: #{tpu_custom_call.1} parent=0 // pred_region
    _
  $region17: #{tpu_custom_call.1} parent=0 // pred_fallthru
    _

</llo_original>
